<compile_context>
chip_gen: v7x
topology: tpu7x:2x2x1
jax: 0.10.0
libtpu: 0.0.40
codegen_flags: <defaults>
</compile_context>

<pallas_src>
import functools

import jax
import jax.numpy as jnp
from jax.experimental import pallas as pl
from jax.experimental.pallas import tpu as pltpu

# MXU operand dtype; accumulation is always f32. Set to jnp.float32 for bit-exact f32 math.
COMPUTE_DTYPE = jnp.bfloat16
NPAD = 128  # fc2 output lane padding (unmasked final store); wrapper slices true outputs.


# ----------------------------- fused Pallas kernel ------------------------------

def _fused_forward_kernel(img_ref, lat_ref, wc_ref, bc_ref, wf_ref, wl_ref, rb_ref,
                          w1_ref, b1_ref, w2_ref, b2_ref, o_ref):
    f32 = jnp.float32

    # --- feature_extractor: Conv2d(3x3, s2, p1) + ReLU, as ONE dense matmul ---
    # conv was materialized offline as [C*H*W, Cout*Ho*Wo]; batch tile is the M dim,
    # output (channel, spatial) lives on lanes -> feature is already in PyTorch
    # feature.view(B, -1) order, no relayout needed.
    feat = jnp.dot(img_ref[...], wc_ref[...], preferred_element_type=f32) + bc_ref[...]
    feat = jnp.maximum(feat, 0.0).astype(COMPUTE_DTYPE)

    # --- reduction: Linear(cat(feature, latent)) + ReLU, split-K (no concat) ---
    h = (jnp.dot(feat, wf_ref[...], preferred_element_type=f32)
         + jnp.dot(lat_ref[...], wl_ref[...], preferred_element_type=f32)
         + rb_ref[...])
    h = jnp.maximum(h, 0.0).astype(COMPUTE_DTYPE)

    # --- fc: Linear(256 -> 512) + ReLU + Linear(512 -> out, lane-padded to 128) ---
    h1 = jnp.dot(h, w1_ref[...], preferred_element_type=f32) + b1_ref[...]
    h1 = jnp.maximum(h1, 0.0).astype(COMPUTE_DTYPE)
    out = jnp.dot(h1, w2_ref[...], preferred_element_type=f32) + b2_ref[...]
    o_ref[...] = out.astype(o_ref.dtype)


# ------------------------------ params & prep -----------------------------------

def _kaiming_uniform(key, shape, fan_in):
    # nn.init.kaiming_uniform_(mode='fan_in', nonlinearity='relu')
    bound = jnp.sqrt(6.0 / fan_in)
    return jax.random.uniform(key, shape, jnp.float32, -bound, bound)


def init_params(key, c_in, latent_dim, img_h, img_w, out_features=2):
    ksz, stride, pad, c_out = 3, 2, 1, 8
    ho = (img_h + 2 * pad - ksz) // stride + 1
    wo = (img_w + 2 * pad - ksz) // stride + 1
    feat_dim = c_out * ho * wo
    concat_dim = feat_dim + latent_dim
    red_dim, hid = 256, 512
    k = jax.random.split(key, 4)
    return {
        # PyTorch-style conv weight [Cout, Cin, kh, kw]
        "conv_w": _kaiming_uniform(k[0], (c_out, c_in, ksz, ksz), c_in * ksz * ksz),
        "conv_b": jnp.zeros((c_out,), jnp.float32),
        # Linear weights stored transposed [in, out]
        "red_w": _kaiming_uniform(k[1], (concat_dim, red_dim), concat_dim),
        "red_b": jnp.zeros((red_dim,), jnp.float32),
        "fc1_w": _kaiming_uniform(k[2], (red_dim, hid), red_dim),
        "fc1_b": jnp.zeros((hid,), jnp.float32),
        "fc2_w": _kaiming_uniform(k[3], (hid, out_features), hid),
        "fc2_b": jnp.zeros((out_features,), jnp.float32),
        "meta": dict(c_in=c_in, img_h=img_h, img_w=img_w, ksz=ksz, stride=stride,
                     pad=pad, c_out=c_out, feat_dim=feat_dim, out_features=out_features),
    }


def _conv_to_dense(conv_w, img_h, img_w, stride, pad):
    """Exact dense matrix of the conv linear map: [C*H*W, Cout*Ho*Wo] (NCHW order)."""
    # TODO(synk): for production image sizes this dense matrix is infeasible; build
    # im2col patches in-kernel from a VMEM-resident padded image tile instead.
    c_out, c_in, _, _ = conv_w.shape
    basis = jnp.eye(c_in * img_h * img_w, dtype=jnp.float32).reshape(-1, c_in, img_h, img_w)
    cols = jax.lax.conv_general_dilated(basis, conv_w, (stride, stride),
                                        ((pad, pad), (pad, pad)))   # [CHW, Cout, Ho, Wo]
    return cols.reshape(c_in * img_h * img_w, -1)


def prepare_params(params):
    """One-time, offline weight layout prep (no per-forward cost)."""
    m = params["meta"]
    feat_dim, out_features = m["feat_dim"], m["out_features"]
    hid = params["fc1_w"].shape[1]
    ho_wo = feat_dim // m["c_out"]

    conv_w_dense = _conv_to_dense(params["conv_w"], m["img_h"], m["img_w"],
                                  m["stride"], m["pad"])
    conv_b_dense = jnp.repeat(params["conv_b"], ho_wo).reshape(1, feat_dim)

    # fc2 padded to 128 lanes; padded weight columns AND bias lanes are zero so the
    # wrapper slice [:, :out_features] is the single point of truth.
    fc2_w = jnp.zeros((hid, NPAD), jnp.float32).at[:, :out_features].set(params["fc2_w"])
    fc2_b = jnp.zeros((1, NPAD), jnp.float32).at[:, :out_features].set(params["fc2_b"][None, :])

    return {
        "conv_w": conv_w_dense.astype(COMPUTE_DTYPE),                 # [CHW, feat_dim]
        "conv_b": conv_b_dense,                                       # f32 [1, feat_dim]
        "red_w_feat": params["red_w"][:feat_dim].astype(COMPUTE_DTYPE),  # [feat_dim, 256]
        "red_w_lat": params["red_w"][feat_dim:].astype(COMPUTE_DTYPE),   # [L, 256]
        "red_b": params["red_b"].reshape(1, -1),                      # f32 [1, 256]
        "fc1_w": params["fc1_w"].astype(COMPUTE_DTYPE),               # [256, 512]
        "fc1_b": params["fc1_b"].reshape(1, -1),                      # f32 [1, 512]
        "fc2_w": fc2_w.astype(COMPUTE_DTYPE),                         # [512, 128] padded
        "fc2_b": fc2_b,                                               # f32 [1, 128]
    }


# --------------------------------- wrapper ---------------------------------------

def _round_up(x, m):
    return -(-x // m) * m


def _pick_tile_b(batch):
    # Batch tile = matmul M dim. 256 fills the v6e/v7x MXU natively and gives >=2
    # grid steps (for v7x's two TensorCores) whenever B > 256; small batches use a
    # single sublane-aligned tile.
    return 256 if batch > 256 else _round_up(max(batch, 1), 8)


def _vmem_limit_bytes(prep, tile_b, kimg, latent_dim, feat_dim):
    # Sized from actual use: weights (x2 buffers) + in/out blocks (x2 buffers) +
    # intermediates, with slack.  Kept well under v7x's 64 MiB physical VMEM.
    w_bytes = sum(v.size * v.dtype.itemsize for v in prep.values())
    io_blk = tile_b * (kimg * 2 + latent_dim * 2 + NPAD * 4)
    interm = tile_b * (feat_dim + 256 + 512 + NPAD) * 8
    total = 2 * w_bytes + 2 * io_blk + interm + (4 << 20)
    return int(min(max(total, 8 << 20), 48 << 20))


@functools.partial(jax.jit, static_argnames=("out_features",))
def forward(prep, face_img, latent_vector, *, out_features=2):
    batch = face_img.shape[0]
    kimg, feat_dim = prep["conv_w"].shape
    img_flat = face_img.reshape(batch, -1).astype(COMPUTE_DTYPE)     # [B, C*H*W]
    latent2 = latent_vector.reshape(batch, -1).astype(COMPUTE_DTYPE)  # [B, L]
    lat_dim = latent2.shape[1]
    assert img_flat.shape[1] == kimg

    tile_b = _pick_tile_b(batch)
    b_pad = _round_up(batch, tile_b)
    if b_pad != batch:
        img_flat = jnp.pad(img_flat, ((0, b_pad - batch), (0, 0)))
        latent2 = jnp.pad(latent2, ((0, b_pad - batch), (0, 0)))

    def const_spec(a):  # full-array, VMEM-resident weights
        return pl.BlockSpec(a.shape, lambda b, _nd=a.ndim: (0,) * _nd)

    out = pl.pallas_call(
        _fused_forward_kernel,
        out_shape=jax.ShapeDtypeStruct((b_pad, NPAD), jnp.float32),
        grid=(b_pad // tile_b,),
        in_specs=[
            pl.BlockSpec((tile_b, kimg), lambda b: (b, 0)),    # per-tile flattened images
            pl.BlockSpec((tile_b, lat_dim), lambda b: (b, 0)),  # per-tile latents
            const_spec(prep["conv_w"]), const_spec(prep["conv_b"]),
            const_spec(prep["red_w_feat"]), const_spec(prep["red_w_lat"]),
            const_spec(prep["red_b"]),
            const_spec(prep["fc1_w"]), const_spec(prep["fc1_b"]),
            const_spec(prep["fc2_w"]), const_spec(prep["fc2_b"]),
        ],
        out_specs=pl.BlockSpec((tile_b, NPAD), lambda b: (b, 0)),
        compiler_params=pltpu.CompilerParams(
            dimension_semantics=("parallel",),
            vmem_limit_bytes=_vmem_limit_bytes(prep, tile_b, kimg, lat_dim, feat_dim),
        ),
    )(img_flat, latent2,
      prep["conv_w"], prep["conv_b"],
      prep["red_w_feat"], prep["red_w_lat"], prep["red_b"],
      prep["fc1_w"], prep["fc1_b"],
      prep["fc2_w"], prep["fc2_b"])

    return out[:batch, :out_features]


# ----------------------------------- main -----------------------------------

if __name__ == "__main__":
    key = jax.random.PRNGKey(0)
    k_img, k_lat, k_par = jax.random.split(key, 3)

    B, C, H, W = 2, 4, 16, 16
    latent_dim = 32

    face_img = jax.random.normal(k_img, (B, C, H, W), jnp.float32)
    latent_vector = jax.random.normal(k_lat, (B, latent_dim), jnp.float32)

    params = init_params(k_par, C, latent_dim, H, W, out_features=2)
    prep = prepare_params(params)     # one-time offline layout prep

    out = forward(prep, face_img, latent_vector, out_features=2)
    jax.block_until_ready(out)
    assert out.shape == (B, 2), out.shape

    # Pure-JAX f32 reference of the same instantiated module.
    conv = jax.lax.conv_general_dilated(face_img, params["conv_w"], (2, 2),
                                        ((1, 1), (1, 1)))
    conv = jnp.maximum(conv + params["conv_b"][None, :, None, None], 0.0)
    feat = conv.reshape(B, -1)
    cat = jnp.concatenate([feat, latent_vector.reshape(B, -1)], axis=1)
    h = jnp.maximum(cat @ params["red_w"] + params["red_b"], 0.0)
    h1 = jnp.maximum(h @ params["fc1_w"] + params["fc1_b"], 0.0)
    ref = h1 @ params["fc2_w"] + params["fc2_b"]
    assert jnp.allclose(out, ref, rtol=5e-2, atol=5e-2), \
        float(jnp.max(jnp.abs(out - ref)))

    print("KERNEL_OK")
</pallas_src>

<mosaic_0001>
module attributes {stable_mosaic.version = 11 : i64} {
  func.func @_fused_forward_kernel(%arg0: i32, %arg1: memref<8x1024xbf16, #tpu.memory_space<vmem>>, %arg2: memref<8x32xbf16, #tpu.memory_space<vmem>>, %arg3: memref<1024x512xbf16, #tpu.memory_space<vmem>>, %arg4: memref<1x512xf32, #tpu.memory_space<vmem>>, %arg5: memref<512x256xbf16, #tpu.memory_space<vmem>>, %arg6: memref<32x256xbf16, #tpu.memory_space<vmem>>, %arg7: memref<1x256xf32, #tpu.memory_space<vmem>>, %arg8: memref<256x512xbf16, #tpu.memory_space<vmem>>, %arg9: memref<1x512xf32, #tpu.memory_space<vmem>>, %arg10: memref<512x128xbf16, #tpu.memory_space<vmem>>, %arg11: memref<1x128xf32, #tpu.memory_space<vmem>>, %arg12: memref<8x128xf32, #tpu.memory_space<vmem>>) attributes {dimension_semantics = [#tpu.dimension_semantics<parallel>], iteration_bounds = array<i64: 1>, scalar_prefetch = 0 : i64, scratch_operands = 0 : i64, tpu.core_type = #tpu.core_type<tc>, window_params = [{transform_indices = @transform_0, window_bounds = array<i64: 8, 1024>}, {transform_indices = @transform_1, window_bounds = array<i64: 8, 32>}, {pipeline_mode = #tpu.pipeline_mode<synchronous>, transform_indices = @transform_2, window_bounds = array<i64: 1024, 512>}, {pipeline_mode = #tpu.pipeline_mode<synchronous>, transform_indices = @transform_3, window_bounds = array<i64: 1, 512>}, {pipeline_mode = #tpu.pipeline_mode<synchronous>, transform_indices = @transform_4, window_bounds = array<i64: 512, 256>}, {pipeline_mode = #tpu.pipeline_mode<synchronous>, transform_indices = @transform_5, window_bounds = array<i64: 32, 256>}, {pipeline_mode = #tpu.pipeline_mode<synchronous>, transform_indices = @transform_6, window_bounds = array<i64: 1, 256>}, {pipeline_mode = #tpu.pipeline_mode<synchronous>, transform_indices = @transform_7, window_bounds = array<i64: 256, 512>}, {pipeline_mode = #tpu.pipeline_mode<synchronous>, transform_indices = @transform_8, window_bounds = array<i64: 1, 512>}, {pipeline_mode = #tpu.pipeline_mode<synchronous>, transform_indices = @transform_9, window_bounds = array<i64: 512, 128>}, {pipeline_mode = #tpu.pipeline_mode<synchronous>, transform_indices = @transform_10, window_bounds = array<i64: 1, 128>}, {transform_indices = @transform_11, window_bounds = array<i64: 8, 128>}]} {
    %c0 = arith.constant 0 : index
    %c0_0 = arith.constant 0 : index
    %0 = vector.load %arg1[%c0, %c0_0] : memref<8x1024xbf16, #tpu.memory_space<vmem>>, vector<8x1024xbf16>
    %c0_1 = arith.constant 0 : index
    %c0_2 = arith.constant 0 : index
    %1 = vector.load %arg3[%c0_1, %c0_2] : memref<1024x512xbf16, #tpu.memory_space<vmem>>, vector<1024x512xbf16>
    %cst = arith.constant dense<0.000000e+00> : vector<8x512xf32>
    %2 = tpu.matmul %0, %1, %cst {dimension_numbers = #tpu.dot_dimension_numbers<[1], [0], [0], [1], [0, 0, 1, 1], [], []>} : vector<8x1024xbf16>, vector<1024x512xbf16>, vector<8x512xf32> -> vector<8x512xf32>
    %c0_3 = arith.constant 0 : index
    %c0_4 = arith.constant 0 : index
    %3 = vector.load %arg4[%c0_3, %c0_4] : memref<1x512xf32, #tpu.memory_space<vmem>>, vector<1x512xf32>
    %4 = vector.broadcast %3 : vector<1x512xf32> to vector<8x512xf32>
    %5 = arith.addf %2, %4 : vector<8x512xf32>
    %cst_5 = arith.constant 0.000000e+00 : f32
    %6 = vector.broadcast %cst_5 : f32 to vector<8x512xf32>
    %7 = arith.maximumf %5, %6 : vector<8x512xf32>
    %8 = arith.truncf %7 : vector<8x512xf32> to vector<8x512xbf16>
    %c0_6 = arith.constant 0 : index
    %c0_7 = arith.constant 0 : index
    %9 = vector.load %arg5[%c0_6, %c0_7] : memref<512x256xbf16, #tpu.memory_space<vmem>>, vector<512x256xbf16>
    %cst_8 = arith.constant dense<0.000000e+00> : vector<8x256xf32>
    %10 = tpu.matmul %8, %9, %cst_8 {dimension_numbers = #tpu.dot_dimension_numbers<[1], [0], [0], [1], [0, 0, 1, 1], [], []>} : vector<8x512xbf16>, vector<512x256xbf16>, vector<8x256xf32> -> vector<8x256xf32>
    %c0_9 = arith.constant 0 : index
    %c0_10 = arith.constant 0 : index
    %11 = vector.load %arg2[%c0_9, %c0_10] : memref<8x32xbf16, #tpu.memory_space<vmem>>, vector<8x32xbf16>
    %c0_11 = arith.constant 0 : index
    %c0_12 = arith.constant 0 : index
    %12 = vector.load %arg6[%c0_11, %c0_12] : memref<32x256xbf16, #tpu.memory_space<vmem>>, vector<32x256xbf16>
    %cst_13 = arith.constant dense<0.000000e+00> : vector<8x256xf32>
    %13 = tpu.matmul %11, %12, %cst_13 {dimension_numbers = #tpu.dot_dimension_numbers<[1], [0], [0], [1], [0, 0, 1, 1], [], []>} : vector<8x32xbf16>, vector<32x256xbf16>, vector<8x256xf32> -> vector<8x256xf32>
    %14 = arith.addf %10, %13 : vector<8x256xf32>
    %c0_14 = arith.constant 0 : index
    %c0_15 = arith.constant 0 : index
    %15 = vector.load %arg7[%c0_14, %c0_15] : memref<1x256xf32, #tpu.memory_space<vmem>>, vector<1x256xf32>
    %16 = vector.broadcast %15 : vector<1x256xf32> to vector<8x256xf32>
    %17 = arith.addf %14, %16 : vector<8x256xf32>
    %cst_16 = arith.constant 0.000000e+00 : f32
    %18 = vector.broadcast %cst_16 : f32 to vector<8x256xf32>
    %19 = arith.maximumf %17, %18 : vector<8x256xf32>
    %20 = arith.truncf %19 : vector<8x256xf32> to vector<8x256xbf16>
    %c0_17 = arith.constant 0 : index
    %c0_18 = arith.constant 0 : index
    %21 = vector.load %arg8[%c0_17, %c0_18] : memref<256x512xbf16, #tpu.memory_space<vmem>>, vector<256x512xbf16>
    %cst_19 = arith.constant dense<0.000000e+00> : vector<8x512xf32>
    %22 = tpu.matmul %20, %21, %cst_19 {dimension_numbers = #tpu.dot_dimension_numbers<[1], [0], [0], [1], [0, 0, 1, 1], [], []>} : vector<8x256xbf16>, vector<256x512xbf16>, vector<8x512xf32> -> vector<8x512xf32>
    %c0_20 = arith.constant 0 : index
    %c0_21 = arith.constant 0 : index
    %23 = vector.load %arg9[%c0_20, %c0_21] : memref<1x512xf32, #tpu.memory_space<vmem>>, vector<1x512xf32>
    %24 = vector.broadcast %23 : vector<1x512xf32> to vector<8x512xf32>
    %25 = arith.addf %22, %24 : vector<8x512xf32>
    %cst_22 = arith.constant 0.000000e+00 : f32
    %26 = vector.broadcast %cst_22 : f32 to vector<8x512xf32>
    %27 = arith.maximumf %25, %26 : vector<8x512xf32>
    %28 = arith.truncf %27 : vector<8x512xf32> to vector<8x512xbf16>
    %c0_23 = arith.constant 0 : index
    %c0_24 = arith.constant 0 : index
    %29 = vector.load %arg10[%c0_23, %c0_24] : memref<512x128xbf16, #tpu.memory_space<vmem>>, vector<512x128xbf16>
    %cst_25 = arith.constant dense<0.000000e+00> : vector<8x128xf32>
    %30 = tpu.matmul %28, %29, %cst_25 {dimension_numbers = #tpu.dot_dimension_numbers<[1], [0], [0], [1], [0, 0, 1, 1], [], []>} : vector<8x512xbf16>, vector<512x128xbf16>, vector<8x128xf32> -> vector<8x128xf32>
    %c0_26 = arith.constant 0 : index
    %c0_27 = arith.constant 0 : index
    %31 = vector.load %arg11[%c0_26, %c0_27] : memref<1x128xf32, #tpu.memory_space<vmem>>, vector<1x128xf32>
    %32 = vector.broadcast %31 : vector<1x128xf32> to vector<8x128xf32>
    %33 = arith.addf %30, %32 : vector<8x128xf32>
    %c0_28 = arith.constant 0 : index
    %c0_29 = arith.constant 0 : index
    %34 = vector.load %arg12[%c0_28, %c0_29] : memref<8x128xf32, #tpu.memory_space<vmem>>, vector<8x128xf32>
    tpu.vector_store %arg12[%c0_28, %c0_29], %33 {strides = array<i32>} : memref<8x128xf32, #tpu.memory_space<vmem>>, vector<8x128xf32>,
    return
  }
  func.func @transform_0(%arg0: i32) -> (i32, i32) {
    %c0_i32 = arith.constant 0 : i32
    %c0_i32_0 = arith.constant 0 : i32
    return %arg0, %c0_i32 : i32, i32
  }
  func.func @transform_1(%arg0: i32) -> (i32, i32) {
    %c0_i32 = arith.constant 0 : i32
    %c0_i32_0 = arith.constant 0 : i32
    return %arg0, %c0_i32 : i32, i32
  }
  func.func @transform_2(%arg0: i32) -> (i32, i32) {
    %c0_i32 = arith.constant 0 : i32
    %c0_i32_0 = arith.constant 0 : i32
    %c0_i32_1 = arith.constant 0 : i32
    return %c0_i32, %c0_i32_0 : i32, i32
  }
  func.func @transform_3(%arg0: i32) -> (i32, i32) {
    %c0_i32 = arith.constant 0 : i32
    %c0_i32_0 = arith.constant 0 : i32
    %c0_i32_1 = arith.constant 0 : i32
    return %c0_i32, %c0_i32_0 : i32, i32
  }
  func.func @transform_4(%arg0: i32) -> (i32, i32) {
    %c0_i32 = arith.constant 0 : i32
    %c0_i32_0 = arith.constant 0 : i32
    %c0_i32_1 = arith.constant 0 : i32
    return %c0_i32, %c0_i32_0 : i32, i32
  }
  func.func @transform_5(%arg0: i32) -> (i32, i32) {
    %c0_i32 = arith.constant 0 : i32
    %c0_i32_0 = arith.constant 0 : i32
    %c0_i32_1 = arith.constant 0 : i32
    return %c0_i32, %c0_i32_0 : i32, i32
  }
  func.func @transform_6(%arg0: i32) -> (i32, i32) {
    %c0_i32 = arith.constant 0 : i32
    %c0_i32_0 = arith.constant 0 : i32
    %c0_i32_1 = arith.constant 0 : i32
    return %c0_i32, %c0_i32_0 : i32, i32
  }
  func.func @transform_7(%arg0: i32) -> (i32, i32) {
    %c0_i32 = arith.constant 0 : i32
    %c0_i32_0 = arith.constant 0 : i32
    %c0_i32_1 = arith.constant 0 : i32
    return %c0_i32, %c0_i32_0 : i32, i32
  }
  func.func @transform_8(%arg0: i32) -> (i32, i32) {
    %c0_i32 = arith.constant 0 : i32
    %c0_i32_0 = arith.constant 0 : i32
    %c0_i32_1 = arith.constant 0 : i32
    return %c0_i32, %c0_i32_0 : i32, i32
  }
  func.func @transform_9(%arg0: i32) -> (i32, i32) {
    %c0_i32 = arith.constant 0 : i32
    %c0_i32_0 = arith.constant 0 : i32
    %c0_i32_1 = arith.constant 0 : i32
    return %c0_i32, %c0_i32_0 : i32, i32
  }
  func.func @transform_10(%arg0: i32) -> (i32, i32) {
    %c0_i32 = arith.constant 0 : i32
    %c0_i32_0 = arith.constant 0 : i32
    %c0_i32_1 = arith.constant 0 : i32
    return %c0_i32, %c0_i32_0 : i32, i32
  }
  func.func @transform_11(%arg0: i32) -> (i32, i32) {
    %c0_i32 = arith.constant 0 : i32
    %c0_i32_0 = arith.constant 0 : i32
    return %arg0, %c0_i32 : i32, i32
  }
}

</mosaic_0001>

<llo_original>
// kernel: forward.1
$region0: #{forward.1}
  #allocation0 [shape = 'u32[]', space=smem, size = 0x4, offset = 0x4, fixed_abs, tag = 'smem constant byte address 0x4 - core index']
  #allocation1 [shape = 'u32[144,128]{1,0:T(1,128)}', space=vmem, size = 0x12000, scoped, tag = 'internal scratch']
  %s0 = inlined_call_operand.vmem [shape: bf16[8,1024], index: 0, kind: input, shape index: {}]
  %s1 = inlined_call_operand.vmem [shape: bf16[8,32], index: 1, kind: input, shape index: {}]
  %s2 = inlined_call_operand.hbm [shape: bf16[1024,512], index: 2, kind: input, shape index: {}]
  %s3 = inlined_call_operand.vmem [shape: f32[1,512], index: 3, kind: input, shape index: {}]
  %s4 = inlined_call_operand.hbm [shape: bf16[512,256], index: 4, kind: input, shape index: {}]
  %s5 = inlined_call_operand.vmem [shape: bf16[32,256], index: 5, kind: input, shape index: {}]
  %s6 = inlined_call_operand.vmem [shape: f32[1,256], index: 6, kind: input, shape index: {}]
  %s7 = inlined_call_operand.hbm [shape: bf16[256,512], index: 7, kind: input, shape index: {}]
  %s8 = inlined_call_operand.vmem [shape: f32[1,512], index: 8, kind: input, shape index: {}]
  %s9 = inlined_call_operand.vmem [shape: bf16[512,128], index: 9, kind: input, shape index: {}]
  %s10 = inlined_call_operand.vmem [shape: f32[1,128], index: 10, kind: input, shape index: {}]
  %s11 = inlined_call_operand.vmem [shape: f32[8,128], index: 11, kind: output, shape index: {}]
  %s12 = sld [smem:[#allocation0]]
  $region66: #{forward.1} parent=0
    _
  %s14 = ssub.s32 1, %s12
  %s15 = scalar_select 0, %s14, %s12
  $region1: #{forward.1} parent=0
    #allocation2 [shape = 'u8[1048576]{0}', space=vmem, size = 0x100000, scoped, tag = 'input window, operand 2, single buffered']
    #allocation3 [shape = 's32[1]{0}', space=sflag, size = 0x4, scoped, tag = 'scoped memory for forward.1']
    #allocation4 [shape = 'u8[262144]{0}', space=vmem, size = 0x40000, scoped, tag = 'input window, operand 4, single buffered']
    #allocation5 [shape = 's32[1]{0}', space=sflag, size = 0x4, scoped, tag = 'scoped memory for forward.1']
    #allocation6 [shape = 'u8[262144]{0}', space=vmem, size = 0x40000, scoped, tag = 'input window, operand 7, single buffered']
    %16 = vsyncpa [#allocation3], 0
    %17 = vsyncpa [#allocation5], 0
    // Predicated region
    $region2: #{forward.1} parent=1 // pred_check
      _
    $region3: #{forward.1} parent=1 // pred_check_branch
      %19 = sbr.rel (0) target = $region5
    $region4: #{forward.1} parent=1 // pred_region
      _
    $region5: #{forward.1} parent=1 // pred_fallthru
      _
    // Predicated region
    $region6: #{forward.1} parent=1 // pred_check
      _
    $region7: #{forward.1} parent=1 // pred_check_branch
      %21 = sbr.rel (0) target = $region9
    $region8: #{forward.1} parent=1 // pred_region
      _
    $region9: #{forward.1} parent=1 // pred_fallthru
      _
    // Predicated region
    $region10: #{forward.1} parent=1 // pred_check
      _
    $region11: #{forward.1} parent=1 // pred_check_branch
      %23 = sbr.rel (0) target = $region13
    $region12: #{forward.1} parent=1 // pred_region
      %s25 = ssub.s32 32768, 32768
      %26 = vsyncadd [#allocation3], %s25
      %s27 = sshll.u32 [#allocation2], 4
      %s28 = int_to_ptr.vmem [resolvable:$true] %s27
      %33 = dma.hbm_to_vmem [thread:$0]  %s2, 32768, %s28, [#allocation3], 256, 256, 16
    $region13: #{forward.1} parent=1 // pred_fallthru
      _
    // Predicated region
    $region14: #{forward.1} parent=1 // pred_check
      _
    $region15: #{forward.1} parent=1 // pred_check_branch
      %35 = sbr.rel (0) target = $region17
    $region16: #{forward.1} parent=1 // pred_region
      _
    $region17: #{forward.1} parent=1 // pred_fallthru
      _
    // Predicated region
    $region18: #{forward.1} parent=1 // pred_check
      _
    $region19: #{forward.1} parent=1 // pred_check_branch
      %37 = sbr.rel (0) target = $region21
    $region20: #{forward.1} parent=1 // pred_region
      %s39 = ssub.s32 8192, 8192
      %40 = vsyncadd [#allocation5], %s39
      %s41 = sshll.u32 [#allocation4], 4
      %s42 = int_to_ptr.vmem [resolvable:$true] %s41
      %47 = dma.hbm_to_vmem [thread:$0]  %s4, 8192, %s42, [#allocation5], 128, 128, 8
    $region21: #{forward.1} parent=1 // pred_fallthru
      _
    // Predicated region
    $region22: #{forward.1} parent=1 // pred_check
      _
    $region23: #{forward.1} parent=1 // pred_check_branch
      %49 = sbr.rel (0) target = $region25
    $region24: #{forward.1} parent=1 // pred_region
      _
    $region25: #{forward.1} parent=1 // pred_fallthru
      _
    // Predicated region
    $region26: #{forward.1} parent=1 // pred_check
      _
    $region27: #{forward.1} parent=1 // pred_check_branch
      %51 = sbr.rel (0) target = $region29
    $region28: #{forward.1} parent=1 // pred_region
      _
    $region29: #{forward.1} parent=1 // pred_fallthru
      _
    // Predicated region
    $region30: #{forward.1} parent=1 // pred_check
      _
    $region31: #{forward.1} parent=1 // pred_check_branch
      %53 = sbr.rel (0) target = $region33
    $region32: #{forward.1} parent=1 // pred_region
      %s55 = ssub.s32 8192, 8192
      %56 = vsyncadd [#allocation5], %s55
      %s57 = sshll.u32 [#allocation6], 4
      %s58 = int_to_ptr.vmem [resolvable:$true] %s57
      %63 = dma.hbm_to_vmem [thread:$0]  %s7, 8192, %s58, [#allocation5], 256, 256, 16
    $region33: #{forward.1} parent=1 // pred_fallthru
      _
    // Predicated region
    $region34: #{forward.1} parent=1 // pred_check
      _
    $region35: #{forward.1} parent=1 // pred_check_branch
      %65 = sbr.rel (0) target = $region37
    $region36: #{forward.1} parent=1 // pred_region
      _
    $region37: #{forward.1} parent=1 // pred_fallthru
      _
    // Predicated region
    $region38: #{forward.1} parent=1 // pred_check
      _
    $region39: #{forward.1} parent=1 // pred_check_branch
      %67 = sbr.rel (0) target = $region41
    $region40: #{forward.1} parent=1 // pred_region
      _
    $region41: #{forward.1} parent=1 // pred_fallthru
      _
    // Predicated region
    $region42: #{forward.1} parent=1 // pred_check
      _
    $region43: #{forward.1} parent=1 // pred_check_branch
      %69 = sbr.rel (0) target = $region45
    $region44: #{forward.1} parent=1 // pred_region
      _
    $region45: #{forward.1} parent=1 // pred_fallthru
      _
    // Predicated region
    $region46: #{forward.1} parent=1 // pred_check
      _
    $region47: #{forward.1} parent=1 // pred_check_branch
      %71 = sbr.rel (0) target = $region49
    $region48: #{forward.1} parent=1 // pred_region
      %72 = dma.done [#allocation3], 32768
    $region49: #{forward.1} parent=1 // pred_fallthru
      _
    // Predicated region
    $region50: #{forward.1} parent=1 // pred_check
      _
    $region51: #{forward.1} parent=1 // pred_check_branch
      %74 = sbr.rel (0) target = $region53
    $region52: #{forward.1} parent=1 // pred_region
      %75 = dma.done [#allocation5], 8192
    $region53: #{forward.1} parent=1 // pred_fallthru
      _
    // Predicated region
    $region54: #{forward.1} parent=1 // pred_check
      _
    $region55: #{forward.1} parent=1 // pred_check_branch
      %77 = sbr.rel (0) target = $region57
    $region56: #{forward.1} parent=1 // pred_region
      %78 = dma.done [#allocation5], 8192
    $region57: #{forward.1} parent=1 // pred_fallthru
      _
    %v80 = vld [vmem:[%s0] sm:$0xff]
    %v81 = vld [vmem:[%s0 + $0x8] sm:$0xff]
    %v82 = vld [vmem:[%s0 + $0x10] sm:$0xff]
    %v83 = vld [vmem:[%s0 + $0x18] sm:$0xff]
    %v84 = vld [vmem:[#allocation2] sm:$0xff]
    %v85 = vld [vmem:[#allocation2 + $0x8] sm:$0xff]
    %v86 = vld [vmem:[#allocation2 + $0x10] sm:$0xff]
    %v87 = vld [vmem:[#allocation2 + $0x18] sm:$0xff]
    %v88 = vld [vmem:[#allocation2 + $0x20] sm:$0xff]
    %v89 = vld [vmem:[#allocation2 + $0x28] sm:$0xff]
    %v90 = vld [vmem:[#allocation2 + $0x30] sm:$0xff]
    %v91 = vld [vmem:[#allocation2 + $0x38] sm:$0xff]
    %v92 = vld [vmem:[#allocation2 + $0x40] sm:$0xff]
    %v93 = vld [vmem:[#allocation2 + $0x48] sm:$0xff]
    %v94 = vld [vmem:[#allocation2 + $0x50] sm:$0xff]
    %v95 = vld [vmem:[#allocation2 + $0x58] sm:$0xff]
    %v96 = vld [vmem:[#allocation2 + $0x60] sm:$0xff]
    %v97 = vld [vmem:[#allocation2 + $0x68] sm:$0xff]
    %v98 = vld [vmem:[#allocation2 + $0x70] sm:$0xff]
    %v99 = vld [vmem:[#allocation2 + $0x78] sm:$0xff]
    %v100 = vld [vmem:[#allocation2 + $0x80] sm:$0xff]
    %v101 = vld [vmem:[#allocation2 + $0x88] sm:$0xff]
    %v102 = vld [vmem:[#allocation2 + $0x90] sm:$0xff]
    %v103 = vld [vmem:[#allocation2 + $0x98] sm:$0xff]
    %v104 = vld [vmem:[#allocation2 + $0xa0] sm:$0xff]
    %v105 = vld [vmem:[#allocation2 + $0xa8] sm:$0xff]
    %v106 = vld [vmem:[#allocation2 + $0xb0] sm:$0xff]
    %v107 = vld [vmem:[#allocation2 + $0xb8] sm:$0xff]
    %v108 = vld [vmem:[#allocation2 + $0xc0] sm:$0xff]
    %v109 = vld [vmem:[#allocation2 + $0xc8] sm:$0xff]
    %v110 = vld [vmem:[#allocation2 + $0xd0] sm:$0xff]
    %v111 = vld [vmem:[#allocation2 + $0xd8] sm:$0xff]
    %v112 = vld [vmem:[#allocation2 + $0xe0] sm:$0xff]
    %v113 = vld [vmem:[#allocation2 + $0xe8] sm:$0xff]
    %v114 = vld [vmem:[#allocation2 + $0xf0] sm:$0xff]
    %v115 = vld [vmem:[#allocation2 + $0xf8] sm:$0xff]
    %v116 = vld [vmem:[#allocation2 + $0x100] sm:$0xff]
    %v117 = vld [vmem:[#allocation2 + $0x108] sm:$0xff]
    %v118 = vld [vmem:[#allocation2 + $0x110] sm:$0xff]
    %v119 = vld [vmem:[#allocation2 + $0x118] sm:$0xff]
    %v120 = vld [vmem:[#allocation2 + $0x120] sm:$0xff]
    %v121 = vld [vmem:[#allocation2 + $0x128] sm:$0xff]
    %v122 = vld [vmem:[#allocation2 + $0x130] sm:$0xff]
    %v123 = vld [vmem:[#allocation2 + $0x138] sm:$0xff]
    %v124 = vld [vmem:[#allocation2 + $0x140] sm:$0xff]
    %v125 = vld [vmem:[#allocation2 + $0x148] sm:$0xff]
    %v126 = vld [vmem:[#allocation2 + $0x150] sm:$0xff]
    %v127 = vld [vmem:[#allocation2 + $0x158] sm:$0xff]
    %v128 = vld [vmem:[#allocation2 + $0x160] sm:$0xff]
    %v129 = vld [vmem:[#allocation2 + $0x168] sm:$0xff]
    %v130 = vld [vmem:[#allocation2 + $0x170] sm:$0xff]
    %v131 = vld [vmem:[#allocation2 + $0x178] sm:$0xff]
    %v132 = vld [vmem:[#allocation2 + $0x180] sm:$0xff]
    %v133 = vld [vmem:[#allocation2 + $0x188] sm:$0xff]
    %v134 = vld [vmem:[#allocation2 + $0x190] sm:$0xff]
    %v135 = vld [vmem:[#allocation2 + $0x198] sm:$0xff]
    %v136 = vld [vmem:[#allocation2 + $0x1a0] sm:$0xff]
    %v137 = vld [vmem:[#allocation2 + $0x1a8] sm:$0xff]
    %v138 = vld [vmem:[#allocation2 + $0x1b0] sm:$0xff]
    %v139 = vld [vmem:[#allocation2 + $0x1b8] sm:$0xff]
    %v140 = vld [vmem:[#allocation2 + $0x1c0] sm:$0xff]
    %v141 = vld [vmem:[#allocation2 + $0x1c8] sm:$0xff]
    %v142 = vld [vmem:[#allocation2 + $0x1d0] sm:$0xff]
    %v143 = vld [vmem:[#allocation2 + $0x1d8] sm:$0xff]
    %v144 = vld [vmem:[#allocation2 + $0x1e0] sm:$0xff]
    %v145 = vld [vmem:[#allocation2 + $0x1e8] sm:$0xff]
    %v146 = vld [vmem:[#allocation2 + $0x1f0] sm:$0xff]
    %v147 = vld [vmem:[#allocation2 + $0x1f8] sm:$0xff]
    %v148 = vld [vmem:[#allocation2 + $0x200] sm:$0xff]
    %v149 = vld [vmem:[#allocation2 + $0x208] sm:$0xff]
    %v150 = vld [vmem:[#allocation2 + $0x210] sm:$0xff]
    %v151 = vld [vmem:[#allocation2 + $0x218] sm:$0xff]
    %v152 = vld [vmem:[#allocation2 + $0x220] sm:$0xff]
    %v153 = vld [vmem:[#allocation2 + $0x228] sm:$0xff]
    %v154 = vld [vmem:[#allocation2 + $0x230] sm:$0xff]
    %v155 = vld [vmem:[#allocation2 + $0x238] sm:$0xff]
    %v156 = vld [vmem:[#allocation2 + $0x240] sm:$0xff]
    %v157 = vld [vmem:[#allocation2 + $0x248] sm:$0xff]
    %v158 = vld [vmem:[#allocation2 + $0x250] sm:$0xff]
    %v159 = vld [vmem:[#allocation2 + $0x258] sm:$0xff]
    %v160 = vld [vmem:[#allocation2 + $0x260] sm:$0xff]
    %v161 = vld [vmem:[#allocation2 + $0x268] sm:$0xff]
    %v162 = vld [vmem:[#allocation2 + $0x270] sm:$0xff]
    %v163 = vld [vmem:[#allocation2 + $0x278] sm:$0xff]
    %v164 = vld [vmem:[#allocation2 + $0x280] sm:$0xff]
    %v165 = vld [vmem:[#allocation2 + $0x288] sm:$0xff]
    %v166 = vld [vmem:[#allocation2 + $0x290] sm:$0xff]
    %v167 = vld [vmem:[#allocation2 + $0x298] sm:$0xff]
    %v168 = vld [vmem:[#allocation2 + $0x2a0] sm:$0xff]
    %v169 = vld [vmem:[#allocation2 + $0x2a8] sm:$0xff]
    %v170 = vld [vmem:[#allocation2 + $0x2b0] sm:$0xff]
    %v171 = vld [vmem:[#allocation2 + $0x2b8] sm:$0xff]
    %v172 = vld [vmem:[#allocation2 + $0x2c0] sm:$0xff]
    %v173 = vld [vmem:[#allocation2 + $0x2c8] sm:$0xff]
    %v174 = vld [vmem:[#allocation2 + $0x2d0] sm:$0xff]
    %v175 = vld [vmem:[#allocation2 + $0x2d8] sm:$0xff]
    %v176 = vld [vmem:[#allocation2 + $0x2e0] sm:$0xff]
    %v177 = vld [vmem:[#allocation2 + $0x2e8] sm:$0xff]
    %v178 = vld [vmem:[#allocation2 + $0x2f0] sm:$0xff]
    %v179 = vld [vmem:[#allocation2 + $0x2f8] sm:$0xff]
    %v180 = vld [vmem:[#allocation2 + $0x300] sm:$0xff]
    %v181 = vld [vmem:[#allocation2 + $0x308] sm:$0xff]
    %v182 = vld [vmem:[#allocation2 + $0x310] sm:$0xff]
    %v183 = vld [vmem:[#allocation2 + $0x318] sm:$0xff]
    %v184 = vld [vmem:[#allocation2 + $0x320] sm:$0xff]
    %v185 = vld [vmem:[#allocation2 + $0x328] sm:$0xff]
    %v186 = vld [vmem:[#allocation2 + $0x330] sm:$0xff]
    %v187 = vld [vmem:[#allocation2 + $0x338] sm:$0xff]
    %v188 = vld [vmem:[#allocation2 + $0x340] sm:$0xff]
    %v189 = vld [vmem:[#allocation2 + $0x348] sm:$0xff]
    %v190 = vld [vmem:[#allocation2 + $0x350] sm:$0xff]
    %v191 = vld [vmem:[#allocation2 + $0x358] sm:$0xff]
    %v192 = vld [vmem:[#allocation2 + $0x360] sm:$0xff]
    %v193 = vld [vmem:[#allocation2 + $0x368] sm:$0xff]
    %v194 = vld [vmem:[#allocation2 + $0x370] sm:$0xff]
    %v195 = vld [vmem:[#allocation2 + $0x378] sm:$0xff]
    %v196 = vld [vmem:[#allocation2 + $0x380] sm:$0xff]
    %v197 = vld [vmem:[#allocation2 + $0x388] sm:$0xff]
    %v198 = vld [vmem:[#allocation2 + $0x390] sm:$0xff]
    %v199 = vld [vmem:[#allocation2 + $0x398] sm:$0xff]
    %v200 = vld [vmem:[#allocation2 + $0x3a0] sm:$0xff]
    %v201 = vld [vmem:[#allocation2 + $0x3a8] sm:$0xff]
    %v202 = vld [vmem:[#allocation2 + $0x3b0] sm:$0xff]
    %v203 = vld [vmem:[#allocation2 + $0x3b8] sm:$0xff]
    %v204 = vld [vmem:[#allocation2 + $0x3c0] sm:$0xff]
    %v205 = vld [vmem:[#allocation2 + $0x3c8] sm:$0xff]
    %v206 = vld [vmem:[#allocation2 + $0x3d0] sm:$0xff]
    %v207 = vld [vmem:[#allocation2 + $0x3d8] sm:$0xff]
    %v208 = vld [vmem:[#allocation2 + $0x3e0] sm:$0xff]
    %v209 = vld [vmem:[#allocation2 + $0x3e8] sm:$0xff]
    %v210 = vld [vmem:[#allocation2 + $0x3f0] sm:$0xff]
    %v211 = vld [vmem:[#allocation2 + $0x3f8] sm:$0xff]
    %v212 = vld [vmem:[#allocation2 + $0x400] sm:$0xff]
    %v213 = vld [vmem:[#allocation2 + $0x408] sm:$0xff]
    %v214 = vld [vmem:[#allocation2 + $0x410] sm:$0xff]
    %v215 = vld [vmem:[#allocation2 + $0x418] sm:$0xff]
    %v216 = vld [vmem:[#allocation2 + $0x420] sm:$0xff]
    %v217 = vld [vmem:[#allocation2 + $0x428] sm:$0xff]
    %v218 = vld [vmem:[#allocation2 + $0x430] sm:$0xff]
    %v219 = vld [vmem:[#allocation2 + $0x438] sm:$0xff]
    %v220 = vld [vmem:[#allocation2 + $0x440] sm:$0xff]
    %v221 = vld [vmem:[#allocation2 + $0x448] sm:$0xff]
    %v222 = vld [vmem:[#allocation2 + $0x450] sm:$0xff]
    %v223 = vld [vmem:[#allocation2 + $0x458] sm:$0xff]
    %v224 = vld [vmem:[#allocation2 + $0x460] sm:$0xff]
    %v225 = vld [vmem:[#allocation2 + $0x468] sm:$0xff]
    %v226 = vld [vmem:[#allocation2 + $0x470] sm:$0xff]
    %v227 = vld [vmem:[#allocation2 + $0x478] sm:$0xff]
    %v228 = vld [vmem:[#allocation2 + $0x480] sm:$0xff]
    %v229 = vld [vmem:[#allocation2 + $0x488] sm:$0xff]
    %v230 = vld [vmem:[#allocation2 + $0x490] sm:$0xff]
    %v231 = vld [vmem:[#allocation2 + $0x498] sm:$0xff]
    %v232 = vld [vmem:[#allocation2 + $0x4a0] sm:$0xff]
    %v233 = vld [vmem:[#allocation2 + $0x4a8] sm:$0xff]
    %v234 = vld [vmem:[#allocation2 + $0x4b0] sm:$0xff]
    %v235 = vld [vmem:[#allocation2 + $0x4b8] sm:$0xff]
    %v236 = vld [vmem:[#allocation2 + $0x4c0] sm:$0xff]
    %v237 = vld [vmem:[#allocation2 + $0x4c8] sm:$0xff]
    %v238 = vld [vmem:[#allocation2 + $0x4d0] sm:$0xff]
    %v239 = vld [vmem:[#allocation2 + $0x4d8] sm:$0xff]
    %v240 = vld [vmem:[#allocation2 + $0x4e0] sm:$0xff]
    %v241 = vld [vmem:[#allocation2 + $0x4e8] sm:$0xff]
    %v242 = vld [vmem:[#allocation2 + $0x4f0] sm:$0xff]
    %v243 = vld [vmem:[#allocation2 + $0x4f8] sm:$0xff]
    %v244 = vld [vmem:[#allocation2 + $0x500] sm:$0xff]
    %v245 = vld [vmem:[#allocation2 + $0x508] sm:$0xff]
    %v246 = vld [vmem:[#allocation2 + $0x510] sm:$0xff]
    %v247 = vld [vmem:[#allocation2 + $0x518] sm:$0xff]
    %v248 = vld [vmem:[#allocation2 + $0x520] sm:$0xff]
    %v249 = vld [vmem:[#allocation2 + $0x528] sm:$0xff]
    %v250 = vld [vmem:[#allocation2 + $0x530] sm:$0xff]
    %v251 = vld [vmem:[#allocation2 + $0x538] sm:$0xff]
    %v252 = vld [vmem:[#allocation2 + $0x540] sm:$0xff]
    %v253 = vld [vmem:[#allocation2 + $0x548] sm:$0xff]
    %v254 = vld [vmem:[#allocation2 + $0x550] sm:$0xff]
    %v255 = vld [vmem:[#allocation2 + $0x558] sm:$0xff]
    %v256 = vld [vmem:[#allocation2 + $0x560] sm:$0xff]
    %v257 = vld [vmem:[#allocation2 + $0x568] sm:$0xff]
    %v258 = vld [vmem:[#allocation2 + $0x570] sm:$0xff]
    %v259 = vld [vmem:[#allocation2 + $0x578] sm:$0xff]
    %v260 = vld [vmem:[#allocation2 + $0x580] sm:$0xff]
    %v261 = vld [vmem:[#allocation2 + $0x588] sm:$0xff]
    %v262 = vld [vmem:[#allocation2 + $0x590] sm:$0xff]
    %v263 = vld [vmem:[#allocation2 + $0x598] sm:$0xff]
    %v264 = vld [vmem:[#allocation2 + $0x5a0] sm:$0xff]
    %v265 = vld [vmem:[#allocation2 + $0x5a8] sm:$0xff]
    %v266 = vld [vmem:[#allocation2 + $0x5b0] sm:$0xff]
    %v267 = vld [vmem:[#allocation2 + $0x5b8] sm:$0xff]
    %v268 = vld [vmem:[#allocation2 + $0x5c0] sm:$0xff]
    %v269 = vld [vmem:[#allocation2 + $0x5c8] sm:$0xff]
    %v270 = vld [vmem:[#allocation2 + $0x5d0] sm:$0xff]
    %v271 = vld [vmem:[#allocation2 + $0x5d8] sm:$0xff]
    %v272 = vld [vmem:[#allocation2 + $0x5e0] sm:$0xff]
    %v273 = vld [vmem:[#allocation2 + $0x5e8] sm:$0xff]
    %v274 = vld [vmem:[#allocation2 + $0x5f0] sm:$0xff]
    %v275 = vld [vmem:[#allocation2 + $0x5f8] sm:$0xff]
    %v276 = vld [vmem:[#allocation2 + $0x600] sm:$0xff]
    %v277 = vld [vmem:[#allocation2 + $0x608] sm:$0xff]
    %v278 = vld [vmem:[#allocation2 + $0x610] sm:$0xff]
    %v279 = vld [vmem:[#allocation2 + $0x618] sm:$0xff]
    %v280 = vld [vmem:[#allocation2 + $0x620] sm:$0xff]
    %v281 = vld [vmem:[#allocation2 + $0x628] sm:$0xff]
    %v282 = vld [vmem:[#allocation2 + $0x630] sm:$0xff]
    %v283 = vld [vmem:[#allocation2 + $0x638] sm:$0xff]
    %v284 = vld [vmem:[#allocation2 + $0x640] sm:$0xff]
    %v285 = vld [vmem:[#allocation2 + $0x648] sm:$0xff]
    %v286 = vld [vmem:[#allocation2 + $0x650] sm:$0xff]
    %v287 = vld [vmem:[#allocation2 + $0x658] sm:$0xff]
    %v288 = vld [vmem:[#allocation2 + $0x660] sm:$0xff]
    %v289 = vld [vmem:[#allocation2 + $0x668] sm:$0xff]
    %v290 = vld [vmem:[#allocation2 + $0x670] sm:$0xff]
    %v291 = vld [vmem:[#allocation2 + $0x678] sm:$0xff]
    %v292 = vld [vmem:[#allocation2 + $0x680] sm:$0xff]
    %v293 = vld [vmem:[#allocation2 + $0x688] sm:$0xff]
    %v294 = vld [vmem:[#allocation2 + $0x690] sm:$0xff]
    %v295 = vld [vmem:[#allocation2 + $0x698] sm:$0xff]
    %v296 = vld [vmem:[#allocation2 + $0x6a0] sm:$0xff]
    %v297 = vld [vmem:[#allocation2 + $0x6a8] sm:$0xff]
    %v298 = vld [vmem:[#allocation2 + $0x6b0] sm:$0xff]
    %v299 = vld [vmem:[#allocation2 + $0x6b8] sm:$0xff]
    %v300 = vld [vmem:[#allocation2 + $0x6c0] sm:$0xff]
    %v301 = vld [vmem:[#allocation2 + $0x6c8] sm:$0xff]
    %v302 = vld [vmem:[#allocation2 + $0x6d0] sm:$0xff]
    %v303 = vld [vmem:[#allocation2 + $0x6d8] sm:$0xff]
    %v304 = vld [vmem:[#allocation2 + $0x6e0] sm:$0xff]
    %v305 = vld [vmem:[#allocation2 + $0x6e8] sm:$0xff]
    %v306 = vld [vmem:[#allocation2 + $0x6f0] sm:$0xff]
    %v307 = vld [vmem:[#allocation2 + $0x6f8] sm:$0xff]
    %v308 = vld [vmem:[#allocation2 + $0x700] sm:$0xff]
    %v309 = vld [vmem:[#allocation2 + $0x708] sm:$0xff]
    %v310 = vld [vmem:[#allocation2 + $0x710] sm:$0xff]
    %v311 = vld [vmem:[#allocation2 + $0x718] sm:$0xff]
    %v312 = vld [vmem:[#allocation2 + $0x720] sm:$0xff]
    %v313 = vld [vmem:[#allocation2 + $0x728] sm:$0xff]
    %v314 = vld [vmem:[#allocation2 + $0x730] sm:$0xff]
    %v315 = vld [vmem:[#allocation2 + $0x738] sm:$0xff]
    %v316 = vld [vmem:[#allocation2 + $0x740] sm:$0xff]
    %v317 = vld [vmem:[#allocation2 + $0x748] sm:$0xff]
    %v318 = vld [vmem:[#allocation2 + $0x750] sm:$0xff]
    %v319 = vld [vmem:[#allocation2 + $0x758] sm:$0xff]
    %v320 = vld [vmem:[#allocation2 + $0x760] sm:$0xff]
    %v321 = vld [vmem:[#allocation2 + $0x768] sm:$0xff]
    %v322 = vld [vmem:[#allocation2 + $0x770] sm:$0xff]
    %v323 = vld [vmem:[#allocation2 + $0x778] sm:$0xff]
    %v324 = vld [vmem:[#allocation2 + $0x780] sm:$0xff]
    %v325 = vld [vmem:[#allocation2 + $0x788] sm:$0xff]
    %v326 = vld [vmem:[#allocation2 + $0x790] sm:$0xff]
    %v327 = vld [vmem:[#allocation2 + $0x798] sm:$0xff]
    %v328 = vld [vmem:[#allocation2 + $0x7a0] sm:$0xff]
    %v329 = vld [vmem:[#allocation2 + $0x7a8] sm:$0xff]
    %v330 = vld [vmem:[#allocation2 + $0x7b0] sm:$0xff]
    %v331 = vld [vmem:[#allocation2 + $0x7b8] sm:$0xff]
    %v332 = vld [vmem:[#allocation2 + $0x7c0] sm:$0xff]
    %v333 = vld [vmem:[#allocation2 + $0x7c8] sm:$0xff]
    %v334 = vld [vmem:[#allocation2 + $0x7d0] sm:$0xff]
    %v335 = vld [vmem:[#allocation2 + $0x7d8] sm:$0xff]
    %v336 = vld [vmem:[#allocation2 + $0x7e0] sm:$0xff]
    %v337 = vld [vmem:[#allocation2 + $0x7e8] sm:$0xff]
    %v338 = vld [vmem:[#allocation2 + $0x7f0] sm:$0xff]
    %v339 = vld [vmem:[#allocation2 + $0x7f8] sm:$0xff]
    %v340 = vld [vmem:[%s3] sm:$0xf]
    %v342 = vlaneseq
    %v343 = vshrl.u32 %v342, 7
    %v344 = vsub.s32 0, %v343
    %v345 = vrot.slane %v340, %v344
    %v346 = vlaneseq
    %v347 = vshrl.u32 %v346, 7
    %v348 = vsub.s32 1, %v347
    %v349 = vrot.slane %v340, %v348
    %v350 = vlaneseq
    %v351 = vshrl.u32 %v350, 7
    %v352 = vsub.s32 2, %v351
    %v353 = vrot.slane %v340, %v352
    %v354 = vlaneseq
    %v355 = vshrl.u32 %v354, 7
    %v356 = vsub.s32 3, %v355
    %v357 = vrot.slane %v340, %v356
    %v366 = vunpack.c.l.b16 %v80
    %v367 = vunpack.c.h.b16 %v80
    %v368 = vunpack.c.l.b16 %v81
    %v369 = vunpack.c.h.b16 %v81
    %v370 = vunpack.c.l.b16 %v82
    %v371 = vunpack.c.h.b16 %v82
    %v372 = vunpack.c.l.b16 %v83
    %v373 = vunpack.c.h.b16 %v83
    %v374 = vpack.c.b16 %v366, %v366
    %v375 = vpack.c.b16 %v367, %v367
    %v376 = vpack.c.b16 %v368, %v368
    %v377 = vpack.c.b16 %v369, %v369
    %v378 = vpack.c.b16 %v370, %v370
    %v379 = vpack.c.b16 %v371, %v371
    %v380 = vpack.c.b16 %v372, %v372
    %v381 = vpack.c.b16 %v373, %v373
    %v646 = vunpack.c.l.b16 %v84
    %v647 = vunpack.c.h.b16 %v84
    %v648 = vunpack.c.l.b16 %v85
    %v649 = vunpack.c.h.b16 %v85
    %v650 = vunpack.c.l.b16 %v86
    %v651 = vunpack.c.h.b16 %v86
    %v652 = vunpack.c.l.b16 %v87
    %v653 = vunpack.c.h.b16 %v87
    %v654 = vunpack.c.l.b16 %v88
    %v655 = vunpack.c.h.b16 %v88
    %v656 = vunpack.c.l.b16 %v89
    %v657 = vunpack.c.h.b16 %v89
    %v658 = vunpack.c.l.b16 %v90
    %v659 = vunpack.c.h.b16 %v90
    %v660 = vunpack.c.l.b16 %v91
    %v661 = vunpack.c.h.b16 %v91
    %v662 = vunpack.c.l.b16 %v92
    %v663 = vunpack.c.h.b16 %v92
    %v664 = vunpack.c.l.b16 %v93
    %v665 = vunpack.c.h.b16 %v93
    %v666 = vunpack.c.l.b16 %v94
    %v667 = vunpack.c.h.b16 %v94
    %v668 = vunpack.c.l.b16 %v95
    %v669 = vunpack.c.h.b16 %v95
    %v670 = vunpack.c.l.b16 %v96
    %v671 = vunpack.c.h.b16 %v96
    %v672 = vunpack.c.l.b16 %v97
    %v673 = vunpack.c.h.b16 %v97
    %v674 = vunpack.c.l.b16 %v98
    %v675 = vunpack.c.h.b16 %v98
    %v676 = vunpack.c.l.b16 %v99
    %v677 = vunpack.c.h.b16 %v99
    %v678 = vunpack.c.l.b16 %v100
    %v679 = vunpack.c.h.b16 %v100
    %v680 = vunpack.c.l.b16 %v101
    %v681 = vunpack.c.h.b16 %v101
    %v682 = vunpack.c.l.b16 %v102
    %v683 = vunpack.c.h.b16 %v102
    %v684 = vunpack.c.l.b16 %v103
    %v685 = vunpack.c.h.b16 %v103
    %v686 = vunpack.c.l.b16 %v104
    %v687 = vunpack.c.h.b16 %v104
    %v688 = vunpack.c.l.b16 %v105
    %v689 = vunpack.c.h.b16 %v105
    %v690 = vunpack.c.l.b16 %v106
    %v691 = vunpack.c.h.b16 %v106
    %v692 = vunpack.c.l.b16 %v107
    %v693 = vunpack.c.h.b16 %v107
    %v694 = vunpack.c.l.b16 %v108
    %v695 = vunpack.c.h.b16 %v108
    %v696 = vunpack.c.l.b16 %v109
    %v697 = vunpack.c.h.b16 %v109
    %v698 = vunpack.c.l.b16 %v110
    %v699 = vunpack.c.h.b16 %v110
    %v700 = vunpack.c.l.b16 %v111
    %v701 = vunpack.c.h.b16 %v111
    %v702 = vunpack.c.l.b16 %v112
    %v703 = vunpack.c.h.b16 %v112
    %v704 = vunpack.c.l.b16 %v113
    %v705 = vunpack.c.h.b16 %v113
    %v706 = vunpack.c.l.b16 %v114
    %v707 = vunpack.c.h.b16 %v114
    %v708 = vunpack.c.l.b16 %v115
    %v709 = vunpack.c.h.b16 %v115
    %v710 = vunpack.c.l.b16 %v116
    %v711 = vunpack.c.h.b16 %v116
    %v712 = vunpack.c.l.b16 %v117
    %v713 = vunpack.c.h.b16 %v117
    %v714 = vunpack.c.l.b16 %v118
    %v715 = vunpack.c.h.b16 %v118
    %v716 = vunpack.c.l.b16 %v119
    %v717 = vunpack.c.h.b16 %v119
    %v718 = vunpack.c.l.b16 %v120
    %v719 = vunpack.c.h.b16 %v120
    %v720 = vunpack.c.l.b16 %v121
    %v721 = vunpack.c.h.b16 %v121
    %v722 = vunpack.c.l.b16 %v122
    %v723 = vunpack.c.h.b16 %v122
    %v724 = vunpack.c.l.b16 %v123
    %v725 = vunpack.c.h.b16 %v123
    %v726 = vunpack.c.l.b16 %v124
    %v727 = vunpack.c.h.b16 %v124
    %v728 = vunpack.c.l.b16 %v125
    %v729 = vunpack.c.h.b16 %v125
    %v730 = vunpack.c.l.b16 %v126
    %v731 = vunpack.c.h.b16 %v126
    %v732 = vunpack.c.l.b16 %v127
    %v733 = vunpack.c.h.b16 %v127
    %v734 = vunpack.c.l.b16 %v128
    %v735 = vunpack.c.h.b16 %v128
    %v736 = vunpack.c.l.b16 %v129
    %v737 = vunpack.c.h.b16 %v129
    %v738 = vunpack.c.l.b16 %v130
    %v739 = vunpack.c.h.b16 %v130
    %v740 = vunpack.c.l.b16 %v131
    %v741 = vunpack.c.h.b16 %v131
    %v742 = vunpack.c.l.b16 %v132
    %v743 = vunpack.c.h.b16 %v132
    %v744 = vunpack.c.l.b16 %v133
    %v745 = vunpack.c.h.b16 %v133
    %v746 = vunpack.c.l.b16 %v134
    %v747 = vunpack.c.h.b16 %v134
    %v748 = vunpack.c.l.b16 %v135
    %v749 = vunpack.c.h.b16 %v135
    %v750 = vunpack.c.l.b16 %v136
    %v751 = vunpack.c.h.b16 %v136
    %v752 = vunpack.c.l.b16 %v137
    %v753 = vunpack.c.h.b16 %v137
    %v754 = vunpack.c.l.b16 %v138
    %v755 = vunpack.c.h.b16 %v138
    %v756 = vunpack.c.l.b16 %v139
    %v757 = vunpack.c.h.b16 %v139
    %v758 = vunpack.c.l.b16 %v140
    %v759 = vunpack.c.h.b16 %v140
    %v760 = vunpack.c.l.b16 %v141
    %v761 = vunpack.c.h.b16 %v141
    %v762 = vunpack.c.l.b16 %v142
    %v763 = vunpack.c.h.b16 %v142
    %v764 = vunpack.c.l.b16 %v143
    %v765 = vunpack.c.h.b16 %v143
    %v766 = vunpack.c.l.b16 %v144
    %v767 = vunpack.c.h.b16 %v144
    %v768 = vunpack.c.l.b16 %v145
    %v769 = vunpack.c.h.b16 %v145
    %v770 = vunpack.c.l.b16 %v146
    %v771 = vunpack.c.h.b16 %v146
    %v772 = vunpack.c.l.b16 %v147
    %v773 = vunpack.c.h.b16 %v147
    %v774 = vunpack.c.l.b16 %v148
    %v775 = vunpack.c.h.b16 %v148
    %v776 = vunpack.c.l.b16 %v149
    %v777 = vunpack.c.h.b16 %v149
    %v778 = vunpack.c.l.b16 %v150
    %v779 = vunpack.c.h.b16 %v150
    %v780 = vunpack.c.l.b16 %v151
    %v781 = vunpack.c.h.b16 %v151
    %v782 = vunpack.c.l.b16 %v152
    %v783 = vunpack.c.h.b16 %v152
    %v784 = vunpack.c.l.b16 %v153
    %v785 = vunpack.c.h.b16 %v153
    %v786 = vunpack.c.l.b16 %v154
    %v787 = vunpack.c.h.b16 %v154
    %v788 = vunpack.c.l.b16 %v155
    %v789 = vunpack.c.h.b16 %v155
    %v790 = vunpack.c.l.b16 %v156
    %v791 = vunpack.c.h.b16 %v156
    %v792 = vunpack.c.l.b16 %v157
    %v793 = vunpack.c.h.b16 %v157
    %v794 = vunpack.c.l.b16 %v158
    %v795 = vunpack.c.h.b16 %v158
    %v796 = vunpack.c.l.b16 %v159
    %v797 = vunpack.c.h.b16 %v159
    %v798 = vunpack.c.l.b16 %v160
    %v799 = vunpack.c.h.b16 %v160
    %v800 = vunpack.c.l.b16 %v161
    %v801 = vunpack.c.h.b16 %v161
    %v802 = vunpack.c.l.b16 %v162
    %v803 = vunpack.c.h.b16 %v162
    %v804 = vunpack.c.l.b16 %v163
    %v805 = vunpack.c.h.b16 %v163
    %v806 = vunpack.c.l.b16 %v164
    %v807 = vunpack.c.h.b16 %v164
    %v808 = vunpack.c.l.b16 %v165
    %v809 = vunpack.c.h.b16 %v165
    %v810 = vunpack.c.l.b16 %v166
    %v811 = vunpack.c.h.b16 %v166
    %v812 = vunpack.c.l.b16 %v167
    %v813 = vunpack.c.h.b16 %v167
    %v814 = vunpack.c.l.b16 %v168
    %v815 = vunpack.c.h.b16 %v168
    %v816 = vunpack.c.l.b16 %v169
    %v817 = vunpack.c.h.b16 %v169
    %v818 = vunpack.c.l.b16 %v170
    %v819 = vunpack.c.h.b16 %v170
    %v820 = vunpack.c.l.b16 %v171
    %v821 = vunpack.c.h.b16 %v171
    %v822 = vunpack.c.l.b16 %v172
    %v823 = vunpack.c.h.b16 %v172
    %v824 = vunpack.c.l.b16 %v173
    %v825 = vunpack.c.h.b16 %v173
    %v826 = vunpack.c.l.b16 %v174
    %v827 = vunpack.c.h.b16 %v174
    %v828 = vunpack.c.l.b16 %v175
    %v829 = vunpack.c.h.b16 %v175
    %v830 = vunpack.c.l.b16 %v176
    %v831 = vunpack.c.h.b16 %v176
    %v832 = vunpack.c.l.b16 %v177
    %v833 = vunpack.c.h.b16 %v177
    %v834 = vunpack.c.l.b16 %v178
    %v835 = vunpack.c.h.b16 %v178
    %v836 = vunpack.c.l.b16 %v179
    %v837 = vunpack.c.h.b16 %v179
    %v838 = vunpack.c.l.b16 %v180
    %v839 = vunpack.c.h.b16 %v180
    %v840 = vunpack.c.l.b16 %v181
    %v841 = vunpack.c.h.b16 %v181
    %v842 = vunpack.c.l.b16 %v182
    %v843 = vunpack.c.h.b16 %v182
    %v844 = vunpack.c.l.b16 %v183
    %v845 = vunpack.c.h.b16 %v183
    %v846 = vunpack.c.l.b16 %v184
    %v847 = vunpack.c.h.b16 %v184
    %v848 = vunpack.c.l.b16 %v185
    %v849 = vunpack.c.h.b16 %v185
    %v850 = vunpack.c.l.b16 %v186
    %v851 = vunpack.c.h.b16 %v186
    %v852 = vunpack.c.l.b16 %v187
    %v853 = vunpack.c.h.b16 %v187
    %v854 = vunpack.c.l.b16 %v188
    %v855 = vunpack.c.h.b16 %v188
    %v856 = vunpack.c.l.b16 %v189
    %v857 = vunpack.c.h.b16 %v189
    %v858 = vunpack.c.l.b16 %v190
    %v859 = vunpack.c.h.b16 %v190
    %v860 = vunpack.c.l.b16 %v191
    %v861 = vunpack.c.h.b16 %v191
    %v862 = vunpack.c.l.b16 %v192
    %v863 = vunpack.c.h.b16 %v192
    %v864 = vunpack.c.l.b16 %v193
    %v865 = vunpack.c.h.b16 %v193
    %v866 = vunpack.c.l.b16 %v194
    %v867 = vunpack.c.h.b16 %v194
    %v868 = vunpack.c.l.b16 %v195
    %v869 = vunpack.c.h.b16 %v195
    %v870 = vunpack.c.l.b16 %v196
    %v871 = vunpack.c.h.b16 %v196
    %v872 = vunpack.c.l.b16 %v197
    %v873 = vunpack.c.h.b16 %v197
    %v874 = vunpack.c.l.b16 %v198
    %v875 = vunpack.c.h.b16 %v198
    %v876 = vunpack.c.l.b16 %v199
    %v877 = vunpack.c.h.b16 %v199
    %v878 = vunpack.c.l.b16 %v200
    %v879 = vunpack.c.h.b16 %v200
    %v880 = vunpack.c.l.b16 %v201
    %v881 = vunpack.c.h.b16 %v201
    %v882 = vunpack.c.l.b16 %v202
    %v883 = vunpack.c.h.b16 %v202
    %v884 = vunpack.c.l.b16 %v203
    %v885 = vunpack.c.h.b16 %v203
    %v886 = vunpack.c.l.b16 %v204
    %v887 = vunpack.c.h.b16 %v204
    %v888 = vunpack.c.l.b16 %v205
    %v889 = vunpack.c.h.b16 %v205
    %v890 = vunpack.c.l.b16 %v206
    %v891 = vunpack.c.h.b16 %v206
    %v892 = vunpack.c.l.b16 %v207
    %v893 = vunpack.c.h.b16 %v207
    %v894 = vunpack.c.l.b16 %v208
    %v895 = vunpack.c.h.b16 %v208
    %v896 = vunpack.c.l.b16 %v209
    %v897 = vunpack.c.h.b16 %v209
    %v898 = vunpack.c.l.b16 %v210
    %v899 = vunpack.c.h.b16 %v210
    %v900 = vunpack.c.l.b16 %v211
    %v901 = vunpack.c.h.b16 %v211
    %v902 = vunpack.c.l.b16 %v212
    %v903 = vunpack.c.h.b16 %v212
    %v904 = vunpack.c.l.b16 %v213
    %v905 = vunpack.c.h.b16 %v213
    %v906 = vunpack.c.l.b16 %v214
    %v907 = vunpack.c.h.b16 %v214
    %v908 = vunpack.c.l.b16 %v215
    %v909 = vunpack.c.h.b16 %v215
    %v910 = vunpack.c.l.b16 %v216
    %v911 = vunpack.c.h.b16 %v216
    %v912 = vunpack.c.l.b16 %v217
    %v913 = vunpack.c.h.b16 %v217
    %v914 = vunpack.c.l.b16 %v218
    %v915 = vunpack.c.h.b16 %v218
    %v916 = vunpack.c.l.b16 %v219
    %v917 = vunpack.c.h.b16 %v219
    %v918 = vunpack.c.l.b16 %v220
    %v919 = vunpack.c.h.b16 %v220
    %v920 = vunpack.c.l.b16 %v221
    %v921 = vunpack.c.h.b16 %v221
    %v922 = vunpack.c.l.b16 %v222
    %v923 = vunpack.c.h.b16 %v222
    %v924 = vunpack.c.l.b16 %v223
    %v925 = vunpack.c.h.b16 %v223
    %v926 = vunpack.c.l.b16 %v224
    %v927 = vunpack.c.h.b16 %v224
    %v928 = vunpack.c.l.b16 %v225
    %v929 = vunpack.c.h.b16 %v225
    %v930 = vunpack.c.l.b16 %v226
    %v931 = vunpack.c.h.b16 %v226
    %v932 = vunpack.c.l.b16 %v227
    %v933 = vunpack.c.h.b16 %v227
    %v934 = vunpack.c.l.b16 %v228
    %v935 = vunpack.c.h.b16 %v228
    %v936 = vunpack.c.l.b16 %v229
    %v937 = vunpack.c.h.b16 %v229
    %v938 = vunpack.c.l.b16 %v230
    %v939 = vunpack.c.h.b16 %v230
    %v940 = vunpack.c.l.b16 %v231
    %v941 = vunpack.c.h.b16 %v231
    %v942 = vunpack.c.l.b16 %v232
    %v943 = vunpack.c.h.b16 %v232
    %v944 = vunpack.c.l.b16 %v233
    %v945 = vunpack.c.h.b16 %v233
    %v946 = vunpack.c.l.b16 %v234
    %v947 = vunpack.c.h.b16 %v234
    %v948 = vunpack.c.l.b16 %v235
    %v949 = vunpack.c.h.b16 %v235
    %v950 = vunpack.c.l.b16 %v236
    %v951 = vunpack.c.h.b16 %v236
    %v952 = vunpack.c.l.b16 %v237
    %v953 = vunpack.c.h.b16 %v237
    %v954 = vunpack.c.l.b16 %v238
    %v955 = vunpack.c.h.b16 %v238
    %v956 = vunpack.c.l.b16 %v239
    %v957 = vunpack.c.h.b16 %v239
    %v958 = vunpack.c.l.b16 %v240
    %v959 = vunpack.c.h.b16 %v240
    %v960 = vunpack.c.l.b16 %v241
    %v961 = vunpack.c.h.b16 %v241
    %v962 = vunpack.c.l.b16 %v242
    %v963 = vunpack.c.h.b16 %v242
    %v964 = vunpack.c.l.b16 %v243
    %v965 = vunpack.c.h.b16 %v243
    %v966 = vunpack.c.l.b16 %v244
    %v967 = vunpack.c.h.b16 %v244
    %v968 = vunpack.c.l.b16 %v245
    %v969 = vunpack.c.h.b16 %v245
    %v970 = vunpack.c.l.b16 %v246
    %v971 = vunpack.c.h.b16 %v246
    %v972 = vunpack.c.l.b16 %v247
    %v973 = vunpack.c.h.b16 %v247
    %v974 = vunpack.c.l.b16 %v248
    %v975 = vunpack.c.h.b16 %v248
    %v976 = vunpack.c.l.b16 %v249
    %v977 = vunpack.c.h.b16 %v249
    %v978 = vunpack.c.l.b16 %v250
    %v979 = vunpack.c.h.b16 %v250
    %v980 = vunpack.c.l.b16 %v251
    %v981 = vunpack.c.h.b16 %v251
    %v982 = vunpack.c.l.b16 %v252
    %v983 = vunpack.c.h.b16 %v252
    %v984 = vunpack.c.l.b16 %v253
    %v985 = vunpack.c.h.b16 %v253
    %v986 = vunpack.c.l.b16 %v254
    %v987 = vunpack.c.h.b16 %v254
    %v988 = vunpack.c.l.b16 %v255
    %v989 = vunpack.c.h.b16 %v255
    %v990 = vunpack.c.l.b16 %v256
    %v991 = vunpack.c.h.b16 %v256
    %v992 = vunpack.c.l.b16 %v257
    %v993 = vunpack.c.h.b16 %v257
    %v994 = vunpack.c.l.b16 %v258
    %v995 = vunpack.c.h.b16 %v258
    %v996 = vunpack.c.l.b16 %v259
    %v997 = vunpack.c.h.b16 %v259
    %v998 = vunpack.c.l.b16 %v260
    %v999 = vunpack.c.h.b16 %v260
    %v1000 = vunpack.c.l.b16 %v261
    %v1001 = vunpack.c.h.b16 %v261
    %v1002 = vunpack.c.l.b16 %v262
    %v1003 = vunpack.c.h.b16 %v262
    %v1004 = vunpack.c.l.b16 %v263
    %v1005 = vunpack.c.h.b16 %v263
    %v1006 = vunpack.c.l.b16 %v264
    %v1007 = vunpack.c.h.b16 %v264
    %v1008 = vunpack.c.l.b16 %v265
    %v1009 = vunpack.c.h.b16 %v265
    %v1010 = vunpack.c.l.b16 %v266
    %v1011 = vunpack.c.h.b16 %v266
    %v1012 = vunpack.c.l.b16 %v267
    %v1013 = vunpack.c.h.b16 %v267
    %v1014 = vunpack.c.l.b16 %v268
    %v1015 = vunpack.c.h.b16 %v268
    %v1016 = vunpack.c.l.b16 %v269
    %v1017 = vunpack.c.h.b16 %v269
    %v1018 = vunpack.c.l.b16 %v270
    %v1019 = vunpack.c.h.b16 %v270
    %v1020 = vunpack.c.l.b16 %v271
    %v1021 = vunpack.c.h.b16 %v271
    %v1022 = vunpack.c.l.b16 %v272
    %v1023 = vunpack.c.h.b16 %v272
    %v1024 = vunpack.c.l.b16 %v273
    %v1025 = vunpack.c.h.b16 %v273
    %v1026 = vunpack.c.l.b16 %v274
    %v1027 = vunpack.c.h.b16 %v274
    %v1028 = vunpack.c.l.b16 %v275
    %v1029 = vunpack.c.h.b16 %v275
    %v1030 = vunpack.c.l.b16 %v276
    %v1031 = vunpack.c.h.b16 %v276
    %v1032 = vunpack.c.l.b16 %v277
    %v1033 = vunpack.c.h.b16 %v277
    %v1034 = vunpack.c.l.b16 %v278
    %v1035 = vunpack.c.h.b16 %v278
    %v1036 = vunpack.c.l.b16 %v279
    %v1037 = vunpack.c.h.b16 %v279
    %v1038 = vunpack.c.l.b16 %v280
    %v1039 = vunpack.c.h.b16 %v280
    %v1040 = vunpack.c.l.b16 %v281
    %v1041 = vunpack.c.h.b16 %v281
    %v1042 = vunpack.c.l.b16 %v282
    %v1043 = vunpack.c.h.b16 %v282
    %v1044 = vunpack.c.l.b16 %v283
    %v1045 = vunpack.c.h.b16 %v283
    %v1046 = vunpack.c.l.b16 %v284
    %v1047 = vunpack.c.h.b16 %v284
    %v1048 = vunpack.c.l.b16 %v285
    %v1049 = vunpack.c.h.b16 %v285
    %v1050 = vunpack.c.l.b16 %v286
    %v1051 = vunpack.c.h.b16 %v286
    %v1052 = vunpack.c.l.b16 %v287
    %v1053 = vunpack.c.h.b16 %v287
    %v1054 = vunpack.c.l.b16 %v288
    %v1055 = vunpack.c.h.b16 %v288
    %v1056 = vunpack.c.l.b16 %v289
    %v1057 = vunpack.c.h.b16 %v289
    %v1058 = vunpack.c.l.b16 %v290
    %v1059 = vunpack.c.h.b16 %v290
    %v1060 = vunpack.c.l.b16 %v291
    %v1061 = vunpack.c.h.b16 %v291
    %v1062 = vunpack.c.l.b16 %v292
    %v1063 = vunpack.c.h.b16 %v292
    %v1064 = vunpack.c.l.b16 %v293
    %v1065 = vunpack.c.h.b16 %v293
    %v1066 = vunpack.c.l.b16 %v294
    %v1067 = vunpack.c.h.b16 %v294
    %v1068 = vunpack.c.l.b16 %v295
    %v1069 = vunpack.c.h.b16 %v295
    %v1070 = vunpack.c.l.b16 %v296
    %v1071 = vunpack.c.h.b16 %v296
    %v1072 = vunpack.c.l.b16 %v297
    %v1073 = vunpack.c.h.b16 %v297
    %v1074 = vunpack.c.l.b16 %v298
    %v1075 = vunpack.c.h.b16 %v298
    %v1076 = vunpack.c.l.b16 %v299
    %v1077 = vunpack.c.h.b16 %v299
    %v1078 = vunpack.c.l.b16 %v300
    %v1079 = vunpack.c.h.b16 %v300
    %v1080 = vunpack.c.l.b16 %v301
    %v1081 = vunpack.c.h.b16 %v301
    %v1082 = vunpack.c.l.b16 %v302
    %v1083 = vunpack.c.h.b16 %v302
    %v1084 = vunpack.c.l.b16 %v303
    %v1085 = vunpack.c.h.b16 %v303
    %v1086 = vunpack.c.l.b16 %v304
    %v1087 = vunpack.c.h.b16 %v304
    %v1088 = vunpack.c.l.b16 %v305
    %v1089 = vunpack.c.h.b16 %v305
    %v1090 = vunpack.c.l.b16 %v306
    %v1091 = vunpack.c.h.b16 %v306
    %v1092 = vunpack.c.l.b16 %v307
    %v1093 = vunpack.c.h.b16 %v307
    %v1094 = vunpack.c.l.b16 %v308
    %v1095 = vunpack.c.h.b16 %v308
    %v1096 = vunpack.c.l.b16 %v309
    %v1097 = vunpack.c.h.b16 %v309
    %v1098 = vunpack.c.l.b16 %v310
    %v1099 = vunpack.c.h.b16 %v310
    %v1100 = vunpack.c.l.b16 %v311
    %v1101 = vunpack.c.h.b16 %v311
    %v1102 = vunpack.c.l.b16 %v312
    %v1103 = vunpack.c.h.b16 %v312
    %v1104 = vunpack.c.l.b16 %v313
    %v1105 = vunpack.c.h.b16 %v313
    %v1106 = vunpack.c.l.b16 %v314
    %v1107 = vunpack.c.h.b16 %v314
    %v1108 = vunpack.c.l.b16 %v315
    %v1109 = vunpack.c.h.b16 %v315
    %v1110 = vunpack.c.l.b16 %v316
    %v1111 = vunpack.c.h.b16 %v316
    %v1112 = vunpack.c.l.b16 %v317
    %v1113 = vunpack.c.h.b16 %v317
    %v1114 = vunpack.c.l.b16 %v318
    %v1115 = vunpack.c.h.b16 %v318
    %v1116 = vunpack.c.l.b16 %v319
    %v1117 = vunpack.c.h.b16 %v319
    %v1118 = vunpack.c.l.b16 %v320
    %v1119 = vunpack.c.h.b16 %v320
    %v1120 = vunpack.c.l.b16 %v321
    %v1121 = vunpack.c.h.b16 %v321
    %v1122 = vunpack.c.l.b16 %v322
    %v1123 = vunpack.c.h.b16 %v322
    %v1124 = vunpack.c.l.b16 %v323
    %v1125 = vunpack.c.h.b16 %v323
    %v1126 = vunpack.c.l.b16 %v324
    %v1127 = vunpack.c.h.b16 %v324
    %v1128 = vunpack.c.l.b16 %v325
    %v1129 = vunpack.c.h.b16 %v325
    %v1130 = vunpack.c.l.b16 %v326
    %v1131 = vunpack.c.h.b16 %v326
    %v1132 = vunpack.c.l.b16 %v327
    %v1133 = vunpack.c.h.b16 %v327
    %v1134 = vunpack.c.l.b16 %v328
    %v1135 = vunpack.c.h.b16 %v328
    %v1136 = vunpack.c.l.b16 %v329
    %v1137 = vunpack.c.h.b16 %v329
    %v1138 = vunpack.c.l.b16 %v330
    %v1139 = vunpack.c.h.b16 %v330
    %v1140 = vunpack.c.l.b16 %v331
    %v1141 = vunpack.c.h.b16 %v331
    %v1142 = vunpack.c.l.b16 %v332
    %v1143 = vunpack.c.h.b16 %v332
    %v1144 = vunpack.c.l.b16 %v333
    %v1145 = vunpack.c.h.b16 %v333
    %v1146 = vunpack.c.l.b16 %v334
    %v1147 = vunpack.c.h.b16 %v334
    %v1148 = vunpack.c.l.b16 %v335
    %v1149 = vunpack.c.h.b16 %v335
    %v1150 = vunpack.c.l.b16 %v336
    %v1151 = vunpack.c.h.b16 %v336
    %v1152 = vunpack.c.l.b16 %v337
    %v1153 = vunpack.c.h.b16 %v337
    %v1154 = vunpack.c.l.b16 %v338
    %v1155 = vunpack.c.h.b16 %v338
    %v1156 = vunpack.c.l.b16 %v339
    %v1157 = vunpack.c.h.b16 %v339
    %v1158 = vpack.c.b16 %v650, %v646
    %v1159 = vpack.c.b16 %v651, %v647
    %v1160 = vpack.c.b16 %v652, %v648
    %v1161 = vpack.c.b16 %v653, %v649
    %v1162 = vpack.c.b16 %v658, %v654
    %v1163 = vpack.c.b16 %v659, %v655
    %v1164 = vpack.c.b16 %v660, %v656
    %v1165 = vpack.c.b16 %v661, %v657
    %v1166 = vpack.c.b16 %v666, %v662
    %v1167 = vpack.c.b16 %v667, %v663
    %v1168 = vpack.c.b16 %v668, %v664
    %v1169 = vpack.c.b16 %v669, %v665
    %v1170 = vpack.c.b16 %v674, %v670
    %v1171 = vpack.c.b16 %v675, %v671
    %v1172 = vpack.c.b16 %v676, %v672
    %v1173 = vpack.c.b16 %v677, %v673
    %v1174 = vpack.c.b16 %v682, %v678
    %v1175 = vpack.c.b16 %v683, %v679
    %v1176 = vpack.c.b16 %v684, %v680
    %v1177 = vpack.c.b16 %v685, %v681
    %v1178 = vpack.c.b16 %v690, %v686
    %v1179 = vpack.c.b16 %v691, %v687
    %v1180 = vpack.c.b16 %v692, %v688
    %v1181 = vpack.c.b16 %v693, %v689
    %v1182 = vpack.c.b16 %v698, %v694
    %v1183 = vpack.c.b16 %v699, %v695
    %v1184 = vpack.c.b16 %v700, %v696
    %v1185 = vpack.c.b16 %v701, %v697
    %v1186 = vpack.c.b16 %v706, %v702
    %v1187 = vpack.c.b16 %v707, %v703
    %v1188 = vpack.c.b16 %v708, %v704
    %v1189 = vpack.c.b16 %v709, %v705
    %v1190 = vpack.c.b16 %v714, %v710
    %v1191 = vpack.c.b16 %v715, %v711
    %v1192 = vpack.c.b16 %v716, %v712
    %v1193 = vpack.c.b16 %v717, %v713
    %v1194 = vpack.c.b16 %v722, %v718
    %v1195 = vpack.c.b16 %v723, %v719
    %v1196 = vpack.c.b16 %v724, %v720
    %v1197 = vpack.c.b16 %v725, %v721
    %v1198 = vpack.c.b16 %v730, %v726
    %v1199 = vpack.c.b16 %v731, %v727
    %v1200 = vpack.c.b16 %v732, %v728
    %v1201 = vpack.c.b16 %v733, %v729
    %v1202 = vpack.c.b16 %v738, %v734
    %v1203 = vpack.c.b16 %v739, %v735
    %v1204 = vpack.c.b16 %v740, %v736
    %v1205 = vpack.c.b16 %v741, %v737
    %v1206 = vpack.c.b16 %v746, %v742
    %v1207 = vpack.c.b16 %v747, %v743
    %v1208 = vpack.c.b16 %v748, %v744
    %v1209 = vpack.c.b16 %v749, %v745
    %v1210 = vpack.c.b16 %v754, %v750
    %v1211 = vpack.c.b16 %v755, %v751
    %v1212 = vpack.c.b16 %v756, %v752
    %v1213 = vpack.c.b16 %v757, %v753
    %v1214 = vpack.c.b16 %v762, %v758
    %v1215 = vpack.c.b16 %v763, %v759
    %v1216 = vpack.c.b16 %v764, %v760
    %v1217 = vpack.c.b16 %v765, %v761
    %v1218 = vpack.c.b16 %v770, %v766
    %v1219 = vpack.c.b16 %v771, %v767
    %v1220 = vpack.c.b16 %v772, %v768
    %v1221 = vpack.c.b16 %v773, %v769
    %v1222 = vpack.c.b16 %v778, %v774
    %v1223 = vpack.c.b16 %v779, %v775
    %v1224 = vpack.c.b16 %v780, %v776
    %v1225 = vpack.c.b16 %v781, %v777
    %v1226 = vpack.c.b16 %v786, %v782
    %v1227 = vpack.c.b16 %v787, %v783
    %v1228 = vpack.c.b16 %v788, %v784
    %v1229 = vpack.c.b16 %v789, %v785
    %v1230 = vpack.c.b16 %v794, %v790
    %v1231 = vpack.c.b16 %v795, %v791
    %v1232 = vpack.c.b16 %v796, %v792
    %v1233 = vpack.c.b16 %v797, %v793
    %v1234 = vpack.c.b16 %v802, %v798
    %v1235 = vpack.c.b16 %v803, %v799
    %v1236 = vpack.c.b16 %v804, %v800
    %v1237 = vpack.c.b16 %v805, %v801
    %v1238 = vpack.c.b16 %v810, %v806
    %v1239 = vpack.c.b16 %v811, %v807
    %v1240 = vpack.c.b16 %v812, %v808
    %v1241 = vpack.c.b16 %v813, %v809
    %v1242 = vpack.c.b16 %v818, %v814
    %v1243 = vpack.c.b16 %v819, %v815
    %v1244 = vpack.c.b16 %v820, %v816
    %v1245 = vpack.c.b16 %v821, %v817
    %v1246 = vpack.c.b16 %v826, %v822
    %v1247 = vpack.c.b16 %v827, %v823
    %v1248 = vpack.c.b16 %v828, %v824
    %v1249 = vpack.c.b16 %v829, %v825
    %v1250 = vpack.c.b16 %v834, %v830
    %v1251 = vpack.c.b16 %v835, %v831
    %v1252 = vpack.c.b16 %v836, %v832
    %v1253 = vpack.c.b16 %v837, %v833
    %v1254 = vpack.c.b16 %v842, %v838
    %v1255 = vpack.c.b16 %v843, %v839
    %v1256 = vpack.c.b16 %v844, %v840
    %v1257 = vpack.c.b16 %v845, %v841
    %v1258 = vpack.c.b16 %v850, %v846
    %v1259 = vpack.c.b16 %v851, %v847
    %v1260 = vpack.c.b16 %v852, %v848
    %v1261 = vpack.c.b16 %v853, %v849
    %v1262 = vpack.c.b16 %v858, %v854
    %v1263 = vpack.c.b16 %v859, %v855
    %v1264 = vpack.c.b16 %v860, %v856
    %v1265 = vpack.c.b16 %v861, %v857
    %v1266 = vpack.c.b16 %v866, %v862
    %v1267 = vpack.c.b16 %v867, %v863
    %v1268 = vpack.c.b16 %v868, %v864
    %v1269 = vpack.c.b16 %v869, %v865
    %v1270 = vpack.c.b16 %v874, %v870
    %v1271 = vpack.c.b16 %v875, %v871
    %v1272 = vpack.c.b16 %v876, %v872
    %v1273 = vpack.c.b16 %v877, %v873
    %v1274 = vpack.c.b16 %v882, %v878
    %v1275 = vpack.c.b16 %v883, %v879
    %v1276 = vpack.c.b16 %v884, %v880
    %v1277 = vpack.c.b16 %v885, %v881
    %v1278 = vpack.c.b16 %v890, %v886
    %v1279 = vpack.c.b16 %v891, %v887
    %v1280 = vpack.c.b16 %v892, %v888
    %v1281 = vpack.c.b16 %v893, %v889
    %v1282 = vpack.c.b16 %v898, %v894
    %v1283 = vpack.c.b16 %v899, %v895
    %v1284 = vpack.c.b16 %v900, %v896
    %v1285 = vpack.c.b16 %v901, %v897
    %v1286 = vpack.c.b16 %v906, %v902
    %v1287 = vpack.c.b16 %v907, %v903
    %v1288 = vpack.c.b16 %v908, %v904
    %v1289 = vpack.c.b16 %v909, %v905
    %v1290 = vpack.c.b16 %v914, %v910
    %v1291 = vpack.c.b16 %v915, %v911
    %v1292 = vpack.c.b16 %v916, %v912
    %v1293 = vpack.c.b16 %v917, %v913
    %v1294 = vpack.c.b16 %v922, %v918
    %v1295 = vpack.c.b16 %v923, %v919
    %v1296 = vpack.c.b16 %v924, %v920
    %v1297 = vpack.c.b16 %v925, %v921
    %v1298 = vpack.c.b16 %v930, %v926
    %v1299 = vpack.c.b16 %v931, %v927
    %v1300 = vpack.c.b16 %v932, %v928
    %v1301 = vpack.c.b16 %v933, %v929
    %v1302 = vpack.c.b16 %v938, %v934
    %v1303 = vpack.c.b16 %v939, %v935
    %v1304 = vpack.c.b16 %v940, %v936
    %v1305 = vpack.c.b16 %v941, %v937
    %v1306 = vpack.c.b16 %v946, %v942
    %v1307 = vpack.c.b16 %v947, %v943
    %v1308 = vpack.c.b16 %v948, %v944
    %v1309 = vpack.c.b16 %v949, %v945
    %v1310 = vpack.c.b16 %v954, %v950
    %v1311 = vpack.c.b16 %v955, %v951
    %v1312 = vpack.c.b16 %v956, %v952
    %v1313 = vpack.c.b16 %v957, %v953
    %v1314 = vpack.c.b16 %v962, %v958
    %v1315 = vpack.c.b16 %v963, %v959
    %v1316 = vpack.c.b16 %v964, %v960
    %v1317 = vpack.c.b16 %v965, %v961
    %v1318 = vpack.c.b16 %v970, %v966
    %v1319 = vpack.c.b16 %v971, %v967
    %v1320 = vpack.c.b16 %v972, %v968
    %v1321 = vpack.c.b16 %v973, %v969
    %v1322 = vpack.c.b16 %v978, %v974
    %v1323 = vpack.c.b16 %v979, %v975
    %v1324 = vpack.c.b16 %v980, %v976
    %v1325 = vpack.c.b16 %v981, %v977
    %v1326 = vpack.c.b16 %v986, %v982
    %v1327 = vpack.c.b16 %v987, %v983
    %v1328 = vpack.c.b16 %v988, %v984
    %v1329 = vpack.c.b16 %v989, %v985
    %v1330 = vpack.c.b16 %v994, %v990
    %v1331 = vpack.c.b16 %v995, %v991
    %v1332 = vpack.c.b16 %v996, %v992
    %v1333 = vpack.c.b16 %v997, %v993
    %v1334 = vpack.c.b16 %v1002, %v998
    %v1335 = vpack.c.b16 %v1003, %v999
    %v1336 = vpack.c.b16 %v1004, %v1000
    %v1337 = vpack.c.b16 %v1005, %v1001
    %v1338 = vpack.c.b16 %v1010, %v1006
    %v1339 = vpack.c.b16 %v1011, %v1007
    %v1340 = vpack.c.b16 %v1012, %v1008
    %v1341 = vpack.c.b16 %v1013, %v1009
    %v1342 = vpack.c.b16 %v1018, %v1014
    %v1343 = vpack.c.b16 %v1019, %v1015
    %v1344 = vpack.c.b16 %v1020, %v1016
    %v1345 = vpack.c.b16 %v1021, %v1017
    %v1346 = vpack.c.b16 %v1026, %v1022
    %v1347 = vpack.c.b16 %v1027, %v1023
    %v1348 = vpack.c.b16 %v1028, %v1024
    %v1349 = vpack.c.b16 %v1029, %v1025
    %v1350 = vpack.c.b16 %v1034, %v1030
    %v1351 = vpack.c.b16 %v1035, %v1031
    %v1352 = vpack.c.b16 %v1036, %v1032
    %v1353 = vpack.c.b16 %v1037, %v1033
    %v1354 = vpack.c.b16 %v1042, %v1038
    %v1355 = vpack.c.b16 %v1043, %v1039
    %v1356 = vpack.c.b16 %v1044, %v1040
    %v1357 = vpack.c.b16 %v1045, %v1041
    %v1358 = vpack.c.b16 %v1050, %v1046
    %v1359 = vpack.c.b16 %v1051, %v1047
    %v1360 = vpack.c.b16 %v1052, %v1048
    %v1361 = vpack.c.b16 %v1053, %v1049
    %v1362 = vpack.c.b16 %v1058, %v1054
    %v1363 = vpack.c.b16 %v1059, %v1055
    %v1364 = vpack.c.b16 %v1060, %v1056
    %v1365 = vpack.c.b16 %v1061, %v1057
    %v1366 = vpack.c.b16 %v1066, %v1062
    %v1367 = vpack.c.b16 %v1067, %v1063
    %v1368 = vpack.c.b16 %v1068, %v1064
    %v1369 = vpack.c.b16 %v1069, %v1065
    %v1370 = vpack.c.b16 %v1074, %v1070
    %v1371 = vpack.c.b16 %v1075, %v1071
    %v1372 = vpack.c.b16 %v1076, %v1072
    %v1373 = vpack.c.b16 %v1077, %v1073
    %v1374 = vpack.c.b16 %v1082, %v1078
    %v1375 = vpack.c.b16 %v1083, %v1079
    %v1376 = vpack.c.b16 %v1084, %v1080
    %v1377 = vpack.c.b16 %v1085, %v1081
    %v1378 = vpack.c.b16 %v1090, %v1086
    %v1379 = vpack.c.b16 %v1091, %v1087
    %v1380 = vpack.c.b16 %v1092, %v1088
    %v1381 = vpack.c.b16 %v1093, %v1089
    %v1382 = vpack.c.b16 %v1098, %v1094
    %v1383 = vpack.c.b16 %v1099, %v1095
    %v1384 = vpack.c.b16 %v1100, %v1096
    %v1385 = vpack.c.b16 %v1101, %v1097
    %v1386 = vpack.c.b16 %v1106, %v1102
    %v1387 = vpack.c.b16 %v1107, %v1103
    %v1388 = vpack.c.b16 %v1108, %v1104
    %v1389 = vpack.c.b16 %v1109, %v1105
    %v1390 = vpack.c.b16 %v1114, %v1110
    %v1391 = vpack.c.b16 %v1115, %v1111
    %v1392 = vpack.c.b16 %v1116, %v1112
    %v1393 = vpack.c.b16 %v1117, %v1113
    %v1394 = vpack.c.b16 %v1122, %v1118
    %v1395 = vpack.c.b16 %v1123, %v1119
    %v1396 = vpack.c.b16 %v1124, %v1120
    %v1397 = vpack.c.b16 %v1125, %v1121
    %v1398 = vpack.c.b16 %v1130, %v1126
    %v1399 = vpack.c.b16 %v1131, %v1127
    %v1400 = vpack.c.b16 %v1132, %v1128
    %v1401 = vpack.c.b16 %v1133, %v1129
    %v1402 = vpack.c.b16 %v1138, %v1134
    %v1403 = vpack.c.b16 %v1139, %v1135
    %v1404 = vpack.c.b16 %v1140, %v1136
    %v1405 = vpack.c.b16 %v1141, %v1137
    %v1406 = vpack.c.b16 %v1146, %v1142
    %v1407 = vpack.c.b16 %v1147, %v1143
    %v1408 = vpack.c.b16 %v1148, %v1144
    %v1409 = vpack.c.b16 %v1149, %v1145
    %v1410 = vpack.c.b16 %v1154, %v1150
    %v1411 = vpack.c.b16 %v1155, %v1151
    %v1412 = vpack.c.b16 %v1156, %v1152
    %v1413 = vpack.c.b16 %v1157, %v1153
    %1670 = vmatprep.subr.bf16.mxu0 %v1159
    %1671 = vmatpush1.bf16.msra.mxu0 %v1158
    %1672 = vmatprep.subr.bf16.mxu0 %v1163
    %1673 = vmatpush1.bf16.msra.mxu0 %v1162
    %1674 = vmatprep.subr.bf16.mxu0 %v1167
    %1675 = vmatpush1.bf16.msra.mxu0 %v1166
    %1676 = vmatprep.subr.bf16.mxu0 %v1171
    %1677 = vmatpush1.bf16.msra.mxu0 %v1170
    %1678 = vmatprep.subr.bf16.mxu0 %v1175
    %1679 = vmatpush1.bf16.msra.mxu0 %v1174
    %1680 = vmatprep.subr.bf16.mxu0 %v1179
    %1681 = vmatpush1.bf16.msra.mxu0 %v1178
    %1682 = vmatprep.subr.bf16.mxu0 %v1183
    %1683 = vmatpush1.bf16.msra.mxu0 %v1182
    %1684 = vmatprep.subr.bf16.mxu0 %v1187
    %1685 = vmatpush1.bf16.msra.mxu0 %v1186
    %1686 = vmatprep.subr.bf16.mxu0 %v1191
    %1687 = vmatpush1.bf16.msra.mxu0 %v1190
    %1688 = vmatprep.subr.bf16.mxu0 %v1195
    %1689 = vmatpush1.bf16.msra.mxu0 %v1194
    %1690 = vmatprep.subr.bf16.mxu0 %v1199
    %1691 = vmatpush1.bf16.msra.mxu0 %v1198
    %1692 = vmatprep.subr.bf16.mxu0 %v1203
    %1693 = vmatpush1.bf16.msra.mxu0 %v1202
    %1694 = vmatprep.subr.bf16.mxu0 %v1207
    %1695 = vmatpush1.bf16.msra.mxu0 %v1206
    %1696 = vmatprep.subr.bf16.mxu0 %v1211
    %1697 = vmatpush1.bf16.msra.mxu0 %v1210
    %1698 = vmatprep.subr.bf16.mxu0 %v1215
    %1699 = vmatpush1.bf16.msra.mxu0 %v1214
    %1700 = vmatprep.subr.bf16.mxu0 %v1219
    %1701 = vmatpush1.bf16.msra.mxu0 %v1218
    %1702 = vmatprep.mubr.bf16.mxu0 %v375
    %1703 = vmatmul.mubr.bf16.gmra.mrb[0].mxu0 %v374
    %v1704 = vpop.f32.mrb[0].mxu0
    %v1705 = vadd.f32 %v345, %v1704
    %v1706 = vpop.f32.mrb[0].mxu0
    %v1707 = vadd.f32 %v349, %v1706
    %v1708 = vpop.f32.mrb[0].mxu0
    %v1709 = vpop.f32.mrb[0].mxu0
    %1710 = vdwg.mxu0
    %1711 = vmatprep.subr.bf16.mxu0 %v1223
    %1712 = vmatpush1.bf16.msra.mxu0 %v1222
    %1713 = vmatprep.subr.bf16.mxu0 %v1227
    %1714 = vmatpush1.bf16.msra.mxu0 %v1226
    %1715 = vmatprep.subr.bf16.mxu0 %v1231
    %1716 = vmatpush1.bf16.msra.mxu0 %v1230
    %1717 = vmatprep.subr.bf16.mxu0 %v1235
    %1718 = vmatpush1.bf16.msra.mxu0 %v1234
    %1719 = vmatprep.subr.bf16.mxu0 %v1239
    %1720 = vmatpush1.bf16.msra.mxu0 %v1238
    %1721 = vmatprep.subr.bf16.mxu0 %v1243
    %1722 = vmatpush1.bf16.msra.mxu0 %v1242
    %1723 = vmatprep.subr.bf16.mxu0 %v1247
    %1724 = vmatpush1.bf16.msra.mxu0 %v1246
    %1725 = vmatprep.subr.bf16.mxu0 %v1251
    %1726 = vmatpush1.bf16.msra.mxu0 %v1250
    %1727 = vmatprep.subr.bf16.mxu0 %v1255
    %1728 = vmatpush1.bf16.msra.mxu0 %v1254
    %1729 = vmatprep.subr.bf16.mxu0 %v1259
    %1730 = vmatpush1.bf16.msra.mxu0 %v1258
    %1731 = vmatprep.subr.bf16.mxu0 %v1263
    %1732 = vmatpush1.bf16.msra.mxu0 %v1262
    %1733 = vmatprep.subr.bf16.mxu0 %v1267
    %1734 = vmatpush1.bf16.msra.mxu0 %v1266
    %1735 = vmatprep.subr.bf16.mxu0 %v1271
    %1736 = vmatpush1.bf16.msra.mxu0 %v1270
    %1737 = vmatprep.subr.bf16.mxu0 %v1275
    %1738 = vmatpush1.bf16.msra.mxu0 %v1274
    %1739 = vmatprep.subr.bf16.mxu0 %v1279
    %1740 = vmatpush1.bf16.msra.mxu0 %v1278
    %1741 = vmatprep.subr.bf16.mxu0 %v1283
    %1742 = vmatpush1.bf16.msra.mxu0 %v1282
    %1743 = vmatprep.mubr.bf16.mxu0 %v377
    %1744 = vmatmul.mubr.bf16.gmra.mrb[0].mxu0 %v376
    %v1745 = vpop.f32.mrb[0].mxu0
    %v1746 = vadd.f32 %v1705, %v1745
    %v1747 = vpop.f32.mrb[0].mxu0
    %v1748 = vadd.f32 %v1707, %v1747
    %v1749 = vpop.f32.mrb[0].mxu0
    %v1750 = vpop.f32.mrb[0].mxu0
    %1751 = vdwg.mxu0
    %1752 = vmatprep.subr.bf16.mxu0 %v1287
    %1753 = vmatpush1.bf16.msra.mxu0 %v1286
    %1754 = vmatprep.subr.bf16.mxu0 %v1291
    %1755 = vmatpush1.bf16.msra.mxu0 %v1290
    %1756 = vmatprep.subr.bf16.mxu0 %v1295
    %1757 = vmatpush1.bf16.msra.mxu0 %v1294
    %1758 = vmatprep.subr.bf16.mxu0 %v1299
    %1759 = vmatpush1.bf16.msra.mxu0 %v1298
    %1760 = vmatprep.subr.bf16.mxu0 %v1303
    %1761 = vmatpush1.bf16.msra.mxu0 %v1302
    %1762 = vmatprep.subr.bf16.mxu0 %v1307
    %1763 = vmatpush1.bf16.msra.mxu0 %v1306
    %1764 = vmatprep.subr.bf16.mxu0 %v1311
    %1765 = vmatpush1.bf16.msra.mxu0 %v1310
    %1766 = vmatprep.subr.bf16.mxu0 %v1315
    %1767 = vmatpush1.bf16.msra.mxu0 %v1314
    %1768 = vmatprep.subr.bf16.mxu0 %v1319
    %1769 = vmatpush1.bf16.msra.mxu0 %v1318
    %1770 = vmatprep.subr.bf16.mxu0 %v1323
    %1771 = vmatpush1.bf16.msra.mxu0 %v1322
    %1772 = vmatprep.subr.bf16.mxu0 %v1327
    %1773 = vmatpush1.bf16.msra.mxu0 %v1326
    %1774 = vmatprep.subr.bf16.mxu0 %v1331
    %1775 = vmatpush1.bf16.msra.mxu0 %v1330
    %1776 = vmatprep.subr.bf16.mxu0 %v1335
    %1777 = vmatpush1.bf16.msra.mxu0 %v1334
    %1778 = vmatprep.subr.bf16.mxu0 %v1339
    %1779 = vmatpush1.bf16.msra.mxu0 %v1338
    %1780 = vmatprep.subr.bf16.mxu0 %v1343
    %1781 = vmatpush1.bf16.msra.mxu0 %v1342
    %1782 = vmatprep.subr.bf16.mxu0 %v1347
    %1783 = vmatpush1.bf16.msra.mxu0 %v1346
    %1784 = vmatprep.mubr.bf16.mxu0 %v379
    %1785 = vmatmul.mubr.bf16.gmra.mrb[0].mxu0 %v378
    %v1786 = vpop.f32.mrb[0].mxu0
    %v1787 = vadd.f32 %v1746, %v1786
    %v1788 = vpop.f32.mrb[0].mxu0
    %v1789 = vadd.f32 %v1748, %v1788
    %v1790 = vpop.f32.mrb[0].mxu0
    %v1791 = vpop.f32.mrb[0].mxu0
    %1792 = vdwg.mxu0
    %1793 = vmatprep.subr.bf16.mxu0 %v1351
    %1794 = vmatpush1.bf16.msra.mxu0 %v1350
    %1795 = vmatprep.subr.bf16.mxu0 %v1355
    %1796 = vmatpush1.bf16.msra.mxu0 %v1354
    %1797 = vmatprep.subr.bf16.mxu0 %v1359
    %1798 = vmatpush1.bf16.msra.mxu0 %v1358
    %1799 = vmatprep.subr.bf16.mxu0 %v1363
    %1800 = vmatpush1.bf16.msra.mxu0 %v1362
    %1801 = vmatprep.subr.bf16.mxu0 %v1367
    %1802 = vmatpush1.bf16.msra.mxu0 %v1366
    %1803 = vmatprep.subr.bf16.mxu0 %v1371
    %1804 = vmatpush1.bf16.msra.mxu0 %v1370
    %1805 = vmatprep.subr.bf16.mxu0 %v1375
    %1806 = vmatpush1.bf16.msra.mxu0 %v1374
    %1807 = vmatprep.subr.bf16.mxu0 %v1379
    %1808 = vmatpush1.bf16.msra.mxu0 %v1378
    %1809 = vmatprep.subr.bf16.mxu0 %v1383
    %1810 = vmatpush1.bf16.msra.mxu0 %v1382
    %1811 = vmatprep.subr.bf16.mxu0 %v1387
    %1812 = vmatpush1.bf16.msra.mxu0 %v1386
    %1813 = vmatprep.subr.bf16.mxu0 %v1391
    %1814 = vmatpush1.bf16.msra.mxu0 %v1390
    %1815 = vmatprep.subr.bf16.mxu0 %v1395
    %1816 = vmatpush1.bf16.msra.mxu0 %v1394
    %1817 = vmatprep.subr.bf16.mxu0 %v1399
    %1818 = vmatpush1.bf16.msra.mxu0 %v1398
    %1819 = vmatprep.subr.bf16.mxu0 %v1403
    %1820 = vmatpush1.bf16.msra.mxu0 %v1402
    %1821 = vmatprep.subr.bf16.mxu0 %v1407
    %1822 = vmatpush1.bf16.msra.mxu0 %v1406
    %1823 = vmatprep.subr.bf16.mxu0 %v1411
    %1824 = vmatpush1.bf16.msra.mxu0 %v1410
    %1825 = vmatprep.mubr.bf16.mxu0 %v381
    %1826 = vmatmul.mubr.bf16.gmra.mrb[0].mxu0 %v380
    %v1827 = vpop.f32.mrb[0].mxu0
    %v1828 = vadd.f32 %v1787, %v1827
    %v1829 = vpop.f32.mrb[0].mxu0
    %v1830 = vadd.f32 %v1789, %v1829
    %v1831 = vpop.f32.mrb[0].mxu0
    %v1832 = vpop.f32.mrb[0].mxu0
    %1833 = vdwg.mxu0
    %1834 = vmatprep.subr.bf16.mxu0 %v1161
    %1835 = vmatpush1.bf16.msra.mxu0 %v1160
    %1836 = vmatprep.subr.bf16.mxu0 %v1165
    %1837 = vmatpush1.bf16.msra.mxu0 %v1164
    %1838 = vmatprep.subr.bf16.mxu0 %v1169
    %1839 = vmatpush1.bf16.msra.mxu0 %v1168
    %1840 = vmatprep.subr.bf16.mxu0 %v1173
    %1841 = vmatpush1.bf16.msra.mxu0 %v1172
    %1842 = vmatprep.subr.bf16.mxu0 %v1177
    %1843 = vmatpush1.bf16.msra.mxu0 %v1176
    %1844 = vmatprep.subr.bf16.mxu0 %v1181
    %1845 = vmatpush1.bf16.msra.mxu0 %v1180
    %1846 = vmatprep.subr.bf16.mxu0 %v1185
    %1847 = vmatpush1.bf16.msra.mxu0 %v1184
    %1848 = vmatprep.subr.bf16.mxu0 %v1189
    %1849 = vmatpush1.bf16.msra.mxu0 %v1188
    %1850 = vmatprep.subr.bf16.mxu0 %v1193
    %1851 = vmatpush1.bf16.msra.mxu0 %v1192
    %1852 = vmatprep.subr.bf16.mxu0 %v1197
    %1853 = vmatpush1.bf16.msra.mxu0 %v1196
    %1854 = vmatprep.subr.bf16.mxu0 %v1201
    %1855 = vmatpush1.bf16.msra.mxu0 %v1200
    %1856 = vmatprep.subr.bf16.mxu0 %v1205
    %1857 = vmatpush1.bf16.msra.mxu0 %v1204
    %1858 = vmatprep.subr.bf16.mxu0 %v1209
    %1859 = vmatpush1.bf16.msra.mxu0 %v1208
    %1860 = vmatprep.subr.bf16.mxu0 %v1213
    %1861 = vmatpush1.bf16.msra.mxu0 %v1212
    %1862 = vmatprep.subr.bf16.mxu0 %v1217
    %1863 = vmatpush1.bf16.msra.mxu0 %v1216
    %1864 = vmatprep.subr.bf16.mxu0 %v1221
    %1865 = vmatpush1.bf16.msra.mxu0 %v1220
    %1866 = vmatprep.mubr.bf16.mxu0 %v375
    %1867 = vmatmul.mubr.bf16.gmra.mrb[0].mxu0 %v374
    %v1868 = vpop.f32.mrb[0].mxu0
    %v1869 = vadd.f32 %v353, %v1868
    %v1870 = vpop.f32.mrb[0].mxu0
    %v1871 = vadd.f32 %v357, %v1870
    %v1872 = vpop.f32.mrb[0].mxu0
    %v1873 = vpop.f32.mrb[0].mxu0
    %1874 = vdwg.mxu0
    %1875 = vmatprep.subr.bf16.mxu0 %v1225
    %1876 = vmatpush1.bf16.msra.mxu0 %v1224
    %1877 = vmatprep.subr.bf16.mxu0 %v1229
    %1878 = vmatpush1.bf16.msra.mxu0 %v1228
    %1879 = vmatprep.subr.bf16.mxu0 %v1233
    %1880 = vmatpush1.bf16.msra.mxu0 %v1232
    %1881 = vmatprep.subr.bf16.mxu0 %v1237
    %1882 = vmatpush1.bf16.msra.mxu0 %v1236
    %1883 = vmatprep.subr.bf16.mxu0 %v1241
    %1884 = vmatpush1.bf16.msra.mxu0 %v1240
    %1885 = vmatprep.subr.bf16.mxu0 %v1245
    %1886 = vmatpush1.bf16.msra.mxu0 %v1244
    %1887 = vmatprep.subr.bf16.mxu0 %v1249
    %1888 = vmatpush1.bf16.msra.mxu0 %v1248
    %1889 = vmatprep.subr.bf16.mxu0 %v1253
    %1890 = vmatpush1.bf16.msra.mxu0 %v1252
    %1891 = vmatprep.subr.bf16.mxu0 %v1257
    %1892 = vmatpush1.bf16.msra.mxu0 %v1256
    %1893 = vmatprep.subr.bf16.mxu0 %v1261
    %1894 = vmatpush1.bf16.msra.mxu0 %v1260
    %1895 = vmatprep.subr.bf16.mxu0 %v1265
    %1896 = vmatpush1.bf16.msra.mxu0 %v1264
    %1897 = vmatprep.subr.bf16.mxu0 %v1269
    %1898 = vmatpush1.bf16.msra.mxu0 %v1268
    %1899 = vmatprep.subr.bf16.mxu0 %v1273
    %1900 = vmatpush1.bf16.msra.mxu0 %v1272
    %1901 = vmatprep.subr.bf16.mxu0 %v1277
    %1902 = vmatpush1.bf16.msra.mxu0 %v1276
    %1903 = vmatprep.subr.bf16.mxu0 %v1281
    %1904 = vmatpush1.bf16.msra.mxu0 %v1280
    %1905 = vmatprep.subr.bf16.mxu0 %v1285
    %1906 = vmatpush1.bf16.msra.mxu0 %v1284
    %1907 = vmatprep.mubr.bf16.mxu0 %v377
    %1908 = vmatmul.mubr.bf16.gmra.mrb[0].mxu0 %v376
    %v1909 = vpop.f32.mrb[0].mxu0
    %v1910 = vadd.f32 %v1869, %v1909
    %v1911 = vpop.f32.mrb[0].mxu0
    %v1912 = vadd.f32 %v1871, %v1911
    %v1913 = vpop.f32.mrb[0].mxu0
    %v1914 = vpop.f32.mrb[0].mxu0
    %1915 = vdwg.mxu0
    %1916 = vmatprep.subr.bf16.mxu0 %v1289
    %1917 = vmatpush1.bf16.msra.mxu0 %v1288
    %1918 = vmatprep.subr.bf16.mxu0 %v1293
    %1919 = vmatpush1.bf16.msra.mxu0 %v1292
    %1920 = vmatprep.subr.bf16.mxu0 %v1297
    %1921 = vmatpush1.bf16.msra.mxu0 %v1296
    %1922 = vmatprep.subr.bf16.mxu0 %v1301
    %1923 = vmatpush1.bf16.msra.mxu0 %v1300
    %1924 = vmatprep.subr.bf16.mxu0 %v1305
    %1925 = vmatpush1.bf16.msra.mxu0 %v1304
    %1926 = vmatprep.subr.bf16.mxu0 %v1309
    %1927 = vmatpush1.bf16.msra.mxu0 %v1308
    %1928 = vmatprep.subr.bf16.mxu0 %v1313
    %1929 = vmatpush1.bf16.msra.mxu0 %v1312
    %1930 = vmatprep.subr.bf16.mxu0 %v1317
    %1931 = vmatpush1.bf16.msra.mxu0 %v1316
    %1932 = vmatprep.subr.bf16.mxu0 %v1321
    %1933 = vmatpush1.bf16.msra.mxu0 %v1320
    %1934 = vmatprep.subr.bf16.mxu0 %v1325
    %1935 = vmatpush1.bf16.msra.mxu0 %v1324
    %1936 = vmatprep.subr.bf16.mxu0 %v1329
    %1937 = vmatpush1.bf16.msra.mxu0 %v1328
    %1938 = vmatprep.subr.bf16.mxu0 %v1333
    %1939 = vmatpush1.bf16.msra.mxu0 %v1332
    %1940 = vmatprep.subr.bf16.mxu0 %v1337
    %1941 = vmatpush1.bf16.msra.mxu0 %v1336
    %1942 = vmatprep.subr.bf16.mxu0 %v1341
    %1943 = vmatpush1.bf16.msra.mxu0 %v1340
    %1944 = vmatprep.subr.bf16.mxu0 %v1345
    %1945 = vmatpush1.bf16.msra.mxu0 %v1344
    %1946 = vmatprep.subr.bf16.mxu0 %v1349
    %1947 = vmatpush1.bf16.msra.mxu0 %v1348
    %1948 = vmatprep.mubr.bf16.mxu0 %v379
    %1949 = vmatmul.mubr.bf16.gmra.mrb[0].mxu0 %v378
    %v1950 = vpop.f32.mrb[0].mxu0
    %v1951 = vadd.f32 %v1910, %v1950
    %v1952 = vpop.f32.mrb[0].mxu0
    %v1953 = vadd.f32 %v1912, %v1952
    %v1954 = vpop.f32.mrb[0].mxu0
    %v1955 = vpop.f32.mrb[0].mxu0
    %1956 = vdwg.mxu0
    %1957 = vmatprep.subr.bf16.mxu0 %v1353
    %1958 = vmatpush1.bf16.msra.mxu0 %v1352
    %1959 = vmatprep.subr.bf16.mxu0 %v1357
    %1960 = vmatpush1.bf16.msra.mxu0 %v1356
    %1961 = vmatprep.subr.bf16.mxu0 %v1361
    %1962 = vmatpush1.bf16.msra.mxu0 %v1360
    %1963 = vmatprep.subr.bf16.mxu0 %v1365
    %1964 = vmatpush1.bf16.msra.mxu0 %v1364
    %1965 = vmatprep.subr.bf16.mxu0 %v1369
    %1966 = vmatpush1.bf16.msra.mxu0 %v1368
    %1967 = vmatprep.subr.bf16.mxu0 %v1373
    %1968 = vmatpush1.bf16.msra.mxu0 %v1372
    %1969 = vmatprep.subr.bf16.mxu0 %v1377
    %1970 = vmatpush1.bf16.msra.mxu0 %v1376
    %1971 = vmatprep.subr.bf16.mxu0 %v1381
    %1972 = vmatpush1.bf16.msra.mxu0 %v1380
    %1973 = vmatprep.subr.bf16.mxu0 %v1385
    %1974 = vmatpush1.bf16.msra.mxu0 %v1384
    %1975 = vmatprep.subr.bf16.mxu0 %v1389
    %1976 = vmatpush1.bf16.msra.mxu0 %v1388
    %1977 = vmatprep.subr.bf16.mxu0 %v1393
    %1978 = vmatpush1.bf16.msra.mxu0 %v1392
    %1979 = vmatprep.subr.bf16.mxu0 %v1397
    %1980 = vmatpush1.bf16.msra.mxu0 %v1396
    %1981 = vmatprep.subr.bf16.mxu0 %v1401
    %1982 = vmatpush1.bf16.msra.mxu0 %v1400
    %1983 = vmatprep.subr.bf16.mxu0 %v1405
    %1984 = vmatpush1.bf16.msra.mxu0 %v1404
    %1985 = vmatprep.subr.bf16.mxu0 %v1409
    %1986 = vmatpush1.bf16.msra.mxu0 %v1408
    %1987 = vmatprep.subr.bf16.mxu0 %v1413
    %1988 = vmatpush1.bf16.msra.mxu0 %v1412
    %1989 = vmatprep.mubr.bf16.mxu0 %v381
    %1990 = vmatmul.mubr.bf16.gmra.mrb[0].mxu0 %v380
    %v1991 = vpop.f32.mrb[0].mxu0
    %v1992 = vadd.f32 %v1951, %v1991
    %v1993 = vpop.f32.mrb[0].mxu0
    %v1994 = vadd.f32 %v1953, %v1993
    %v1995 = vpop.f32.mrb[0].mxu0
    %v1996 = vpop.f32.mrb[0].mxu0
    %1997 = vdwg.mxu0
    %v1998 = vmax.f32 %v1828, 0.0
    %v1999 = vmax.f32 %v1830, 0.0
    %v2000 = vmax.f32 %v1992, 0.0
    %v2001 = vmax.f32 %v1994, 0.0
    %v2002 = vpack.c.bf16 %v1998, %v1998
    %v2003 = vpack.c.bf16 %v1999, %v1999
    %v2004 = vpack.c.bf16 %v2000, %v2000
    %v2005 = vpack.c.bf16 %v2001, %v2001
    %v2006 = vld [vmem:[#allocation4] sm:$0xff]
    %v2007 = vld [vmem:[#allocation4 + $0x8] sm:$0xff]
    %v2008 = vld [vmem:[#allocation4 + $0x10] sm:$0xff]
    %v2009 = vld [vmem:[#allocation4 + $0x18] sm:$0xff]
    %v2010 = vld [vmem:[#allocation4 + $0x20] sm:$0xff]
    %v2011 = vld [vmem:[#allocation4 + $0x28] sm:$0xff]
    %v2012 = vld [vmem:[#allocation4 + $0x30] sm:$0xff]
    %v2013 = vld [vmem:[#allocation4 + $0x38] sm:$0xff]
    %v2014 = vld [vmem:[#allocation4 + $0x40] sm:$0xff]
    %v2015 = vld [vmem:[#allocation4 + $0x48] sm:$0xff]
    %v2016 = vld [vmem:[#allocation4 + $0x50] sm:$0xff]
    %v2017 = vld [vmem:[#allocation4 + $0x58] sm:$0xff]
    %v2018 = vld [vmem:[#allocation4 + $0x60] sm:$0xff]
    %v2019 = vld [vmem:[#allocation4 + $0x68] sm:$0xff]
    %v2020 = vld [vmem:[#allocation4 + $0x70] sm:$0xff]
    %v2021 = vld [vmem:[#allocation4 + $0x78] sm:$0xff]
    %v2022 = vld [vmem:[#allocation4 + $0x80] sm:$0xff]
    %v2023 = vld [vmem:[#allocation4 + $0x88] sm:$0xff]
    %v2024 = vld [vmem:[#allocation4 + $0x90] sm:$0xff]
    %v2025 = vld [vmem:[#allocation4 + $0x98] sm:$0xff]
    %v2026 = vld [vmem:[#allocation4 + $0xa0] sm:$0xff]
    %v2027 = vld [vmem:[#allocation4 + $0xa8] sm:$0xff]
    %v2028 = vld [vmem:[#allocation4 + $0xb0] sm:$0xff]
    %v2029 = vld [vmem:[#allocation4 + $0xb8] sm:$0xff]
    %v2030 = vld [vmem:[#allocation4 + $0xc0] sm:$0xff]
    %v2031 = vld [vmem:[#allocation4 + $0xc8] sm:$0xff]
    %v2032 = vld [vmem:[#allocation4 + $0xd0] sm:$0xff]
    %v2033 = vld [vmem:[#allocation4 + $0xd8] sm:$0xff]
    %v2034 = vld [vmem:[#allocation4 + $0xe0] sm:$0xff]
    %v2035 = vld [vmem:[#allocation4 + $0xe8] sm:$0xff]
    %v2036 = vld [vmem:[#allocation4 + $0xf0] sm:$0xff]
    %v2037 = vld [vmem:[#allocation4 + $0xf8] sm:$0xff]
    %v2038 = vld [vmem:[#allocation4 + $0x100] sm:$0xff]
    %v2039 = vld [vmem:[#allocation4 + $0x108] sm:$0xff]
    %v2040 = vld [vmem:[#allocation4 + $0x110] sm:$0xff]
    %v2041 = vld [vmem:[#allocation4 + $0x118] sm:$0xff]
    %v2042 = vld [vmem:[#allocation4 + $0x120] sm:$0xff]
    %v2043 = vld [vmem:[#allocation4 + $0x128] sm:$0xff]
    %v2044 = vld [vmem:[#allocation4 + $0x130] sm:$0xff]
    %v2045 = vld [vmem:[#allocation4 + $0x138] sm:$0xff]
    %v2046 = vld [vmem:[#allocation4 + $0x140] sm:$0xff]
    %v2047 = vld [vmem:[#allocation4 + $0x148] sm:$0xff]
    %v2048 = vld [vmem:[#allocation4 + $0x150] sm:$0xff]
    %v2049 = vld [vmem:[#allocation4 + $0x158] sm:$0xff]
    %v2050 = vld [vmem:[#allocation4 + $0x160] sm:$0xff]
    %v2051 = vld [vmem:[#allocation4 + $0x168] sm:$0xff]
    %v2052 = vld [vmem:[#allocation4 + $0x170] sm:$0xff]
    %v2053 = vld [vmem:[#allocation4 + $0x178] sm:$0xff]
    %v2054 = vld [vmem:[#allocation4 + $0x180] sm:$0xff]
    %v2055 = vld [vmem:[#allocation4 + $0x188] sm:$0xff]
    %v2056 = vld [vmem:[#allocation4 + $0x190] sm:$0xff]
    %v2057 = vld [vmem:[#allocation4 + $0x198] sm:$0xff]
    %v2058 = vld [vmem:[#allocation4 + $0x1a0] sm:$0xff]
    %v2059 = vld [vmem:[#allocation4 + $0x1a8] sm:$0xff]
    %v2060 = vld [vmem:[#allocation4 + $0x1b0] sm:$0xff]
    %v2061 = vld [vmem:[#allocation4 + $0x1b8] sm:$0xff]
    %v2062 = vld [vmem:[#allocation4 + $0x1c0] sm:$0xff]
    %v2063 = vld [vmem:[#allocation4 + $0x1c8] sm:$0xff]
    %v2064 = vld [vmem:[#allocation4 + $0x1d0] sm:$0xff]
    %v2065 = vld [vmem:[#allocation4 + $0x1d8] sm:$0xff]
    %v2066 = vld [vmem:[#allocation4 + $0x1e0] sm:$0xff]
    %v2067 = vld [vmem:[#allocation4 + $0x1e8] sm:$0xff]
    %v2068 = vld [vmem:[#allocation4 + $0x1f0] sm:$0xff]
    %v2069 = vld [vmem:[#allocation4 + $0x1f8] sm:$0xff]
    %v2070 = vld [vmem:[%s1] sm:$0xf]
    %v2071 = vld [vmem:[%s5] sm:$0xff]
    %v2072 = vld [vmem:[%s5 + $0x8] sm:$0xff]
    %v2073 = vld [vmem:[%s5 + $0x10] sm:$0xff]
    %v2074 = vld [vmem:[%s5 + $0x18] sm:$0xff]
    %v2079 = vunpack.c.l.b16 %v2071
    %v2080 = vunpack.c.h.b16 %v2071
    %v2081 = vunpack.c.l.b16 %v2072
    %v2082 = vunpack.c.h.b16 %v2072
    %v2083 = vunpack.c.l.b16 %v2073
    %v2084 = vunpack.c.h.b16 %v2073
    %v2085 = vunpack.c.l.b16 %v2074
    %v2086 = vunpack.c.h.b16 %v2074
    %v2087 = vpack.c.b16 %v2081, %v2079
    %v2088 = vpack.c.b16 %v2082, %v2080
    %v2089 = vpack.c.b16 %v2085, %v2083
    %v2090 = vpack.c.b16 %v2086, %v2084
    %vm2095 = vcmask 261120
    %v2097 = vsel %vm2095, %v2070, 0
    %2099 = vmatprep.subr.bf16.mxu0 %v2088
    %2100 = vmatpush1.bf16.msra.mxu0 %v2087
    %2101 = vmatprep.subr.bf16.mxu0 %v2090
    %2102 = vmatpush1.bf16.msra.mxu0 %v2089
    %2103 = vmatprep.subr.bf16.mxu0 0
    %2104 = vmatpush1.bf16.msra.mxu0 0
    %2105 = vmatprep.subr.bf16.mxu0 0
    %2106 = vmatpush1.bf16.msra.mxu0 0
    %2107 = vmatprep.subr.bf16.mxu0 0
    %2108 = vmatpush1.bf16.msra.mxu0 0
    %2109 = vmatprep.subr.bf16.mxu0 0
    %2110 = vmatpush1.bf16.msra.mxu0 0
    %2111 = vmatprep.subr.bf16.mxu0 0
    %2112 = vmatpush1.bf16.msra.mxu0 0
    %2113 = vmatprep.subr.bf16.mxu0 0
    %2114 = vmatpush1.bf16.msra.mxu0 0
    %2115 = vmatprep.subr.bf16.mxu0 0
    %2116 = vmatpush1.bf16.msra.mxu0 0
    %2117 = vmatprep.subr.bf16.mxu0 0
    %2118 = vmatpush1.bf16.msra.mxu0 0
    %2119 = vmatprep.subr.bf16.mxu0 0
    %2120 = vmatpush1.bf16.msra.mxu0 0
    %2121 = vmatprep.subr.bf16.mxu0 0
    %2122 = vmatpush1.bf16.msra.mxu0 0
    %2123 = vmatprep.subr.bf16.mxu0 0
    %2124 = vmatpush1.bf16.msra.mxu0 0
    %2125 = vmatprep.subr.bf16.mxu0 0
    %2126 = vmatpush1.bf16.msra.mxu0 0
    %2127 = vmatprep.subr.bf16.mxu0 0
    %2128 = vmatpush1.bf16.msra.mxu0 0
    %2129 = vmatprep.subr.bf16.mxu0 0
    %2130 = vmatpush1.bf16.msra.mxu0 0
    %2131 = vmatprep.mubr.bf16.mxu0 0
    %2132 = vmatmul.mubr.bf16.gmra.mrb[0].mxu0 %v2097
    %v2133 = vpop.f32.mrb[0].mxu0
    %v2134 = vadd.f32 0.0, %v2133
    %v2135 = vpop.f32.mrb[0].mxu0
    %v2136 = vadd.f32 0.0, %v2135
    %v2137 = vpop.f32.mrb[0].mxu0
    %v2138 = vpop.f32.mrb[0].mxu0
    %2139 = vdwg.mxu0
    %v2204 = vunpack.c.l.b16 %v2006
    %v2205 = vunpack.c.h.b16 %v2006
    %v2206 = vunpack.c.l.b16 %v2007
    %v2207 = vunpack.c.h.b16 %v2007
    %v2208 = vunpack.c.l.b16 %v2008
    %v2209 = vunpack.c.h.b16 %v2008
    %v2210 = vunpack.c.l.b16 %v2009
    %v2211 = vunpack.c.h.b16 %v2009
    %v2212 = vunpack.c.l.b16 %v2010
    %v2213 = vunpack.c.h.b16 %v2010
    %v2214 = vunpack.c.l.b16 %v2011
    %v2215 = vunpack.c.h.b16 %v2011
    %v2216 = vunpack.c.l.b16 %v2012
    %v2217 = vunpack.c.h.b16 %v2012
    %v2218 = vunpack.c.l.b16 %v2013
    %v2219 = vunpack.c.h.b16 %v2013
    %v2220 = vunpack.c.l.b16 %v2014
    %v2221 = vunpack.c.h.b16 %v2014
    %v2222 = vunpack.c.l.b16 %v2015
    %v2223 = vunpack.c.h.b16 %v2015
    %v2224 = vunpack.c.l.b16 %v2016
    %v2225 = vunpack.c.h.b16 %v2016
    %v2226 = vunpack.c.l.b16 %v2017
    %v2227 = vunpack.c.h.b16 %v2017
    %v2228 = vunpack.c.l.b16 %v2018
    %v2229 = vunpack.c.h.b16 %v2018
    %v2230 = vunpack.c.l.b16 %v2019
    %v2231 = vunpack.c.h.b16 %v2019
    %v2232 = vunpack.c.l.b16 %v2020
    %v2233 = vunpack.c.h.b16 %v2020
    %v2234 = vunpack.c.l.b16 %v2021
    %v2235 = vunpack.c.h.b16 %v2021
    %v2236 = vunpack.c.l.b16 %v2022
    %v2237 = vunpack.c.h.b16 %v2022
    %v2238 = vunpack.c.l.b16 %v2023
    %v2239 = vunpack.c.h.b16 %v2023
    %v2240 = vunpack.c.l.b16 %v2024
    %v2241 = vunpack.c.h.b16 %v2024
    %v2242 = vunpack.c.l.b16 %v2025
    %v2243 = vunpack.c.h.b16 %v2025
    %v2244 = vunpack.c.l.b16 %v2026
    %v2245 = vunpack.c.h.b16 %v2026
    %v2246 = vunpack.c.l.b16 %v2027
    %v2247 = vunpack.c.h.b16 %v2027
    %v2248 = vunpack.c.l.b16 %v2028
    %v2249 = vunpack.c.h.b16 %v2028
    %v2250 = vunpack.c.l.b16 %v2029
    %v2251 = vunpack.c.h.b16 %v2029
    %v2252 = vunpack.c.l.b16 %v2030
    %v2253 = vunpack.c.h.b16 %v2030
    %v2254 = vunpack.c.l.b16 %v2031
    %v2255 = vunpack.c.h.b16 %v2031
    %v2256 = vunpack.c.l.b16 %v2032
    %v2257 = vunpack.c.h.b16 %v2032
    %v2258 = vunpack.c.l.b16 %v2033
    %v2259 = vunpack.c.h.b16 %v2033
    %v2260 = vunpack.c.l.b16 %v2034
    %v2261 = vunpack.c.h.b16 %v2034
    %v2262 = vunpack.c.l.b16 %v2035
    %v2263 = vunpack.c.h.b16 %v2035
    %v2264 = vunpack.c.l.b16 %v2036
    %v2265 = vunpack.c.h.b16 %v2036
    %v2266 = vunpack.c.l.b16 %v2037
    %v2267 = vunpack.c.h.b16 %v2037
    %v2268 = vunpack.c.l.b16 %v2038
    %v2269 = vunpack.c.h.b16 %v2038
    %v2270 = vunpack.c.l.b16 %v2039
    %v2271 = vunpack.c.h.b16 %v2039
    %v2272 = vunpack.c.l.b16 %v2040
    %v2273 = vunpack.c.h.b16 %v2040
    %v2274 = vunpack.c.l.b16 %v2041
    %v2275 = vunpack.c.h.b16 %v2041
    %v2276 = vunpack.c.l.b16 %v2042
    %v2277 = vunpack.c.h.b16 %v2042
    %v2278 = vunpack.c.l.b16 %v2043
    %v2279 = vunpack.c.h.b16 %v2043
    %v2280 = vunpack.c.l.b16 %v2044
    %v2281 = vunpack.c.h.b16 %v2044
    %v2282 = vunpack.c.l.b16 %v2045
    %v2283 = vunpack.c.h.b16 %v2045
    %v2284 = vunpack.c.l.b16 %v2046
    %v2285 = vunpack.c.h.b16 %v2046
    %v2286 = vunpack.c.l.b16 %v2047
    %v2287 = vunpack.c.h.b16 %v2047
    %v2288 = vunpack.c.l.b16 %v2048
    %v2289 = vunpack.c.h.b16 %v2048
    %v2290 = vunpack.c.l.b16 %v2049
    %v2291 = vunpack.c.h.b16 %v2049
    %v2292 = vunpack.c.l.b16 %v2050
    %v2293 = vunpack.c.h.b16 %v2050
    %v2294 = vunpack.c.l.b16 %v2051
    %v2295 = vunpack.c.h.b16 %v2051
    %v2296 = vunpack.c.l.b16 %v2052
    %v2297 = vunpack.c.h.b16 %v2052
    %v2298 = vunpack.c.l.b16 %v2053
    %v2299 = vunpack.c.h.b16 %v2053
    %v2300 = vunpack.c.l.b16 %v2054
    %v2301 = vunpack.c.h.b16 %v2054
    %v2302 = vunpack.c.l.b16 %v2055
    %v2303 = vunpack.c.h.b16 %v2055
    %v2304 = vunpack.c.l.b16 %v2056
    %v2305 = vunpack.c.h.b16 %v2056
    %v2306 = vunpack.c.l.b16 %v2057
    %v2307 = vunpack.c.h.b16 %v2057
    %v2308 = vunpack.c.l.b16 %v2058
    %v2309 = vunpack.c.h.b16 %v2058
    %v2310 = vunpack.c.l.b16 %v2059
    %v2311 = vunpack.c.h.b16 %v2059
    %v2312 = vunpack.c.l.b16 %v2060
    %v2313 = vunpack.c.h.b16 %v2060
    %v2314 = vunpack.c.l.b16 %v2061
    %v2315 = vunpack.c.h.b16 %v2061
    %v2316 = vunpack.c.l.b16 %v2062
    %v2317 = vunpack.c.h.b16 %v2062
    %v2318 = vunpack.c.l.b16 %v2063
    %v2319 = vunpack.c.h.b16 %v2063
    %v2320 = vunpack.c.l.b16 %v2064
    %v2321 = vunpack.c.h.b16 %v2064
    %v2322 = vunpack.c.l.b16 %v2065
    %v2323 = vunpack.c.h.b16 %v2065
    %v2324 = vunpack.c.l.b16 %v2066
    %v2325 = vunpack.c.h.b16 %v2066
    %v2326 = vunpack.c.l.b16 %v2067
    %v2327 = vunpack.c.h.b16 %v2067
    %v2328 = vunpack.c.l.b16 %v2068
    %v2329 = vunpack.c.h.b16 %v2068
    %v2330 = vunpack.c.l.b16 %v2069
    %v2331 = vunpack.c.h.b16 %v2069
    %v2332 = vpack.c.b16 %v2206, %v2204
    %v2333 = vpack.c.b16 %v2207, %v2205
    %v2334 = vpack.c.b16 %v2210, %v2208
    %v2335 = vpack.c.b16 %v2211, %v2209
    %v2336 = vpack.c.b16 %v2214, %v2212
    %v2337 = vpack.c.b16 %v2215, %v2213
    %v2338 = vpack.c.b16 %v2218, %v2216
    %v2339 = vpack.c.b16 %v2219, %v2217
    %v2340 = vpack.c.b16 %v2222, %v2220
    %v2341 = vpack.c.b16 %v2223, %v2221
    %v2342 = vpack.c.b16 %v2226, %v2224
    %v2343 = vpack.c.b16 %v2227, %v2225
    %v2344 = vpack.c.b16 %v2230, %v2228
    %v2345 = vpack.c.b16 %v2231, %v2229
    %v2346 = vpack.c.b16 %v2234, %v2232
    %v2347 = vpack.c.b16 %v2235, %v2233
    %v2348 = vpack.c.b16 %v2238, %v2236
    %v2349 = vpack.c.b16 %v2239, %v2237
    %v2350 = vpack.c.b16 %v2242, %v2240
    %v2351 = vpack.c.b16 %v2243, %v2241
    %v2352 = vpack.c.b16 %v2246, %v2244
    %v2353 = vpack.c.b16 %v2247, %v2245
    %v2354 = vpack.c.b16 %v2250, %v2248
    %v2355 = vpack.c.b16 %v2251, %v2249
    %v2356 = vpack.c.b16 %v2254, %v2252
    %v2357 = vpack.c.b16 %v2255, %v2253
    %v2358 = vpack.c.b16 %v2258, %v2256
    %v2359 = vpack.c.b16 %v2259, %v2257
    %v2360 = vpack.c.b16 %v2262, %v2260
    %v2361 = vpack.c.b16 %v2263, %v2261
    %v2362 = vpack.c.b16 %v2266, %v2264
    %v2363 = vpack.c.b16 %v2267, %v2265
    %v2364 = vpack.c.b16 %v2270, %v2268
    %v2365 = vpack.c.b16 %v2271, %v2269
    %v2366 = vpack.c.b16 %v2274, %v2272
    %v2367 = vpack.c.b16 %v2275, %v2273
    %v2368 = vpack.c.b16 %v2278, %v2276
    %v2369 = vpack.c.b16 %v2279, %v2277
    %v2370 = vpack.c.b16 %v2282, %v2280
    %v2371 = vpack.c.b16 %v2283, %v2281
    %v2372 = vpack.c.b16 %v2286, %v2284
    %v2373 = vpack.c.b16 %v2287, %v2285
    %v2374 = vpack.c.b16 %v2290, %v2288
    %v2375 = vpack.c.b16 %v2291, %v2289
    %v2376 = vpack.c.b16 %v2294, %v2292
    %v2377 = vpack.c.b16 %v2295, %v2293
    %v2378 = vpack.c.b16 %v2298, %v2296
    %v2379 = vpack.c.b16 %v2299, %v2297
    %v2380 = vpack.c.b16 %v2302, %v2300
    %v2381 = vpack.c.b16 %v2303, %v2301
    %v2382 = vpack.c.b16 %v2306, %v2304
    %v2383 = vpack.c.b16 %v2307, %v2305
    %v2384 = vpack.c.b16 %v2310, %v2308
    %v2385 = vpack.c.b16 %v2311, %v2309
    %v2386 = vpack.c.b16 %v2314, %v2312
    %v2387 = vpack.c.b16 %v2315, %v2313
    %v2388 = vpack.c.b16 %v2318, %v2316
    %v2389 = vpack.c.b16 %v2319, %v2317
    %v2390 = vpack.c.b16 %v2322, %v2320
    %v2391 = vpack.c.b16 %v2323, %v2321
    %v2392 = vpack.c.b16 %v2326, %v2324
    %v2393 = vpack.c.b16 %v2327, %v2325
    %v2394 = vpack.c.b16 %v2330, %v2328
    %v2395 = vpack.c.b16 %v2331, %v2329
    %2460 = vmatprep.subr.bf16.mxu0 %v2333
    %2461 = vmatpush1.bf16.msra.mxu0 %v2332
    %2462 = vmatprep.subr.bf16.mxu0 %v2335
    %2463 = vmatpush1.bf16.msra.mxu0 %v2334
    %2464 = vmatprep.subr.bf16.mxu0 %v2337
    %2465 = vmatpush1.bf16.msra.mxu0 %v2336
    %2466 = vmatprep.subr.bf16.mxu0 %v2339
    %2467 = vmatpush1.bf16.msra.mxu0 %v2338
    %2468 = vmatprep.subr.bf16.mxu0 %v2341
    %2469 = vmatpush1.bf16.msra.mxu0 %v2340
    %2470 = vmatprep.subr.bf16.mxu0 %v2343
    %2471 = vmatpush1.bf16.msra.mxu0 %v2342
    %2472 = vmatprep.subr.bf16.mxu0 %v2345
    %2473 = vmatpush1.bf16.msra.mxu0 %v2344
    %2474 = vmatprep.subr.bf16.mxu0 %v2347
    %2475 = vmatpush1.bf16.msra.mxu0 %v2346
    %2476 = vmatprep.subr.bf16.mxu0 %v2349
    %2477 = vmatpush1.bf16.msra.mxu0 %v2348
    %2478 = vmatprep.subr.bf16.mxu0 %v2351
    %2479 = vmatpush1.bf16.msra.mxu0 %v2350
    %2480 = vmatprep.subr.bf16.mxu0 %v2353
    %2481 = vmatpush1.bf16.msra.mxu0 %v2352
    %2482 = vmatprep.subr.bf16.mxu0 %v2355
    %2483 = vmatpush1.bf16.msra.mxu0 %v2354
    %2484 = vmatprep.subr.bf16.mxu0 %v2357
    %2485 = vmatpush1.bf16.msra.mxu0 %v2356
    %2486 = vmatprep.subr.bf16.mxu0 %v2359
    %2487 = vmatpush1.bf16.msra.mxu0 %v2358
    %2488 = vmatprep.subr.bf16.mxu0 %v2361
    %2489 = vmatpush1.bf16.msra.mxu0 %v2360
    %2490 = vmatprep.subr.bf16.mxu0 %v2363
    %2491 = vmatpush1.bf16.msra.mxu0 %v2362
    %2492 = vmatprep.mubr.bf16.mxu0 %v2003
    %2493 = vmatmul.mubr.bf16.gmra.mrb[0].mxu0 %v2002
    %v2494 = vpop.f32.mrb[0].mxu0
    %v2495 = vadd.f32 %v2134, %v2494
    %v2496 = vpop.f32.mrb[0].mxu0
    %v2497 = vadd.f32 %v2136, %v2496
    %v2498 = vpop.f32.mrb[0].mxu0
    %v2499 = vpop.f32.mrb[0].mxu0
    %2500 = vdwg.mxu0
    %2501 = vmatprep.subr.bf16.mxu0 %v2365
    %2502 = vmatpush1.bf16.msra.mxu0 %v2364
    %2503 = vmatprep.subr.bf16.mxu0 %v2367
    %2504 = vmatpush1.bf16.msra.mxu0 %v2366
    %2505 = vmatprep.subr.bf16.mxu0 %v2369
    %2506 = vmatpush1.bf16.msra.mxu0 %v2368
    %2507 = vmatprep.subr.bf16.mxu0 %v2371
    %2508 = vmatpush1.bf16.msra.mxu0 %v2370
    %2509 = vmatprep.subr.bf16.mxu0 %v2373
    %2510 = vmatpush1.bf16.msra.mxu0 %v2372
    %2511 = vmatprep.subr.bf16.mxu0 %v2375
    %2512 = vmatpush1.bf16.msra.mxu0 %v2374
    %2513 = vmatprep.subr.bf16.mxu0 %v2377
    %2514 = vmatpush1.bf16.msra.mxu0 %v2376
    %2515 = vmatprep.subr.bf16.mxu0 %v2379
    %2516 = vmatpush1.bf16.msra.mxu0 %v2378
    %2517 = vmatprep.subr.bf16.mxu0 %v2381
    %2518 = vmatpush1.bf16.msra.mxu0 %v2380
    %2519 = vmatprep.subr.bf16.mxu0 %v2383
    %2520 = vmatpush1.bf16.msra.mxu0 %v2382
    %2521 = vmatprep.subr.bf16.mxu0 %v2385
    %2522 = vmatpush1.bf16.msra.mxu0 %v2384
    %2523 = vmatprep.subr.bf16.mxu0 %v2387
    %2524 = vmatpush1.bf16.msra.mxu0 %v2386
    %2525 = vmatprep.subr.bf16.mxu0 %v2389
    %2526 = vmatpush1.bf16.msra.mxu0 %v2388
    %2527 = vmatprep.subr.bf16.mxu0 %v2391
    %2528 = vmatpush1.bf16.msra.mxu0 %v2390
    %2529 = vmatprep.subr.bf16.mxu0 %v2393
    %2530 = vmatpush1.bf16.msra.mxu0 %v2392
    %2531 = vmatprep.subr.bf16.mxu0 %v2395
    %2532 = vmatpush1.bf16.msra.mxu0 %v2394
    %2533 = vmatprep.mubr.bf16.mxu0 %v2005
    %2534 = vmatmul.mubr.bf16.gmra.mrb[0].mxu0 %v2004
    %v2535 = vpop.f32.mrb[0].mxu0
    %v2536 = vadd.f32 %v2495, %v2535
    %v2537 = vpop.f32.mrb[0].mxu0
    %v2538 = vadd.f32 %v2497, %v2537
    %v2539 = vpop.f32.mrb[0].mxu0
    %v2540 = vpop.f32.mrb[0].mxu0
    %2541 = vdwg.mxu0
    %v2542 = vld [vmem:[%s6] sm:$0x3]
    %v2544 = vlaneseq
    %v2545 = vshrl.u32 %v2544, 7
    %v2546 = vsub.s32 0, %v2545
    %v2547 = vrot.slane %v2542, %v2546
    %v2548 = vlaneseq
    %v2549 = vshrl.u32 %v2548, 7
    %v2550 = vsub.s32 1, %v2549
    %v2551 = vrot.slane %v2542, %v2550
    %v2554 = vadd.f32 %v2536, %v2547
    %v2555 = vadd.f32 %v2538, %v2551
    %v2556 = vmax.f32 %v2554, 0.0
    %v2557 = vmax.f32 %v2555, 0.0
    %v2558 = vpack.c.bf16 %v2556, %v2556
    %v2559 = vpack.c.bf16 %v2557, %v2557
    %v2560 = vld [vmem:[#allocation6] sm:$0xff]
    %v2561 = vld [vmem:[#allocation6 + $0x8] sm:$0xff]
    %v2562 = vld [vmem:[#allocation6 + $0x10] sm:$0xff]
    %v2563 = vld [vmem:[#allocation6 + $0x18] sm:$0xff]
    %v2564 = vld [vmem:[#allocation6 + $0x20] sm:$0xff]
    %v2565 = vld [vmem:[#allocation6 + $0x28] sm:$0xff]
    %v2566 = vld [vmem:[#allocation6 + $0x30] sm:$0xff]
    %v2567 = vld [vmem:[#allocation6 + $0x38] sm:$0xff]
    %v2568 = vld [vmem:[#allocation6 + $0x40] sm:$0xff]
    %v2569 = vld [vmem:[#allocation6 + $0x48] sm:$0xff]
    %v2570 = vld [vmem:[#allocation6 + $0x50] sm:$0xff]
    %v2571 = vld [vmem:[#allocation6 + $0x58] sm:$0xff]
    %v2572 = vld [vmem:[#allocation6 + $0x60] sm:$0xff]
    %v2573 = vld [vmem:[#allocation6 + $0x68] sm:$0xff]
    %v2574 = vld [vmem:[#allocation6 + $0x70] sm:$0xff]
    %v2575 = vld [vmem:[#allocation6 + $0x78] sm:$0xff]
    %v2576 = vld [vmem:[#allocation6 + $0x80] sm:$0xff]
    %v2577 = vld [vmem:[#allocation6 + $0x88] sm:$0xff]
    %v2578 = vld [vmem:[#allocation6 + $0x90] sm:$0xff]
    %v2579 = vld [vmem:[#allocation6 + $0x98] sm:$0xff]
    %v2580 = vld [vmem:[#allocation6 + $0xa0] sm:$0xff]
    %v2581 = vld [vmem:[#allocation6 + $0xa8] sm:$0xff]
    %v2582 = vld [vmem:[#allocation6 + $0xb0] sm:$0xff]
    %v2583 = vld [vmem:[#allocation6 + $0xb8] sm:$0xff]
    %v2584 = vld [vmem:[#allocation6 + $0xc0] sm:$0xff]
    %v2585 = vld [vmem:[#allocation6 + $0xc8] sm:$0xff]
    %v2586 = vld [vmem:[#allocation6 + $0xd0] sm:$0xff]
    %v2587 = vld [vmem:[#allocation6 + $0xd8] sm:$0xff]
    %v2588 = vld [vmem:[#allocation6 + $0xe0] sm:$0xff]
    %v2589 = vld [vmem:[#allocation6 + $0xe8] sm:$0xff]
    %v2590 = vld [vmem:[#allocation6 + $0xf0] sm:$0xff]
    %v2591 = vld [vmem:[#allocation6 + $0xf8] sm:$0xff]
    %v2592 = vld [vmem:[#allocation6 + $0x100] sm:$0xff]
    %v2593 = vld [vmem:[#allocation6 + $0x108] sm:$0xff]
    %v2594 = vld [vmem:[#allocation6 + $0x110] sm:$0xff]
    %v2595 = vld [vmem:[#allocation6 + $0x118] sm:$0xff]
    %v2596 = vld [vmem:[#allocation6 + $0x120] sm:$0xff]
    %v2597 = vld [vmem:[#allocation6 + $0x128] sm:$0xff]
    %v2598 = vld [vmem:[#allocation6 + $0x130] sm:$0xff]
    %v2599 = vld [vmem:[#allocation6 + $0x138] sm:$0xff]
    %v2600 = vld [vmem:[#allocation6 + $0x140] sm:$0xff]
    %v2601 = vld [vmem:[#allocation6 + $0x148] sm:$0xff]
    %v2602 = vld [vmem:[#allocation6 + $0x150] sm:$0xff]
    %v2603 = vld [vmem:[#allocation6 + $0x158] sm:$0xff]
    %v2604 = vld [vmem:[#allocation6 + $0x160] sm:$0xff]
    %v2605 = vld [vmem:[#allocation6 + $0x168] sm:$0xff]
    %v2606 = vld [vmem:[#allocation6 + $0x170] sm:$0xff]
    %v2607 = vld [vmem:[#allocation6 + $0x178] sm:$0xff]
    %v2608 = vld [vmem:[#allocation6 + $0x180] sm:$0xff]
    %v2609 = vld [vmem:[#allocation6 + $0x188] sm:$0xff]
    %v2610 = vld [vmem:[#allocation6 + $0x190] sm:$0xff]
    %v2611 = vld [vmem:[#allocation6 + $0x198] sm:$0xff]
    %v2612 = vld [vmem:[#allocation6 + $0x1a0] sm:$0xff]
    %v2613 = vld [vmem:[#allocation6 + $0x1a8] sm:$0xff]
    %v2614 = vld [vmem:[#allocation6 + $0x1b0] sm:$0xff]
    %v2615 = vld [vmem:[#allocation6 + $0x1b8] sm:$0xff]
    %v2616 = vld [vmem:[#allocation6 + $0x1c0] sm:$0xff]
    %v2617 = vld [vmem:[#allocation6 + $0x1c8] sm:$0xff]
    %v2618 = vld [vmem:[#allocation6 + $0x1d0] sm:$0xff]
    %v2619 = vld [vmem:[#allocation6 + $0x1d8] sm:$0xff]
    %v2620 = vld [vmem:[#allocation6 + $0x1e0] sm:$0xff]
    %v2621 = vld [vmem:[#allocation6 + $0x1e8] sm:$0xff]
    %v2622 = vld [vmem:[#allocation6 + $0x1f0] sm:$0xff]
    %v2623 = vld [vmem:[#allocation6 + $0x1f8] sm:$0xff]
    %v2624 = vld [vmem:[%s8] sm:$0xf]
    %v2626 = vlaneseq
    %v2627 = vshrl.u32 %v2626, 7
    %v2628 = vsub.s32 0, %v2627
    %v2629 = vrot.slane %v2624, %v2628
    %v2630 = vlaneseq
    %v2631 = vshrl.u32 %v2630, 7
    %v2632 = vsub.s32 1, %v2631
    %v2633 = vrot.slane %v2624, %v2632
    %v2634 = vlaneseq
    %v2635 = vshrl.u32 %v2634, 7
    %v2636 = vsub.s32 2, %v2635
    %v2637 = vrot.slane %v2624, %v2636
    %v2638 = vlaneseq
    %v2639 = vshrl.u32 %v2638, 7
    %v2640 = vsub.s32 3, %v2639
    %v2641 = vrot.slane %v2624, %v2640
    %v2710 = vunpack.c.l.b16 %v2560
    %v2711 = vunpack.c.h.b16 %v2560
    %v2712 = vunpack.c.l.b16 %v2561
    %v2713 = vunpack.c.h.b16 %v2561
    %v2714 = vunpack.c.l.b16 %v2562
    %v2715 = vunpack.c.h.b16 %v2562
    %v2716 = vunpack.c.l.b16 %v2563
    %v2717 = vunpack.c.h.b16 %v2563
    %v2718 = vunpack.c.l.b16 %v2564
    %v2719 = vunpack.c.h.b16 %v2564
    %v2720 = vunpack.c.l.b16 %v2565
    %v2721 = vunpack.c.h.b16 %v2565
    %v2722 = vunpack.c.l.b16 %v2566
    %v2723 = vunpack.c.h.b16 %v2566
    %v2724 = vunpack.c.l.b16 %v2567
    %v2725 = vunpack.c.h.b16 %v2567
    %v2726 = vunpack.c.l.b16 %v2568
    %v2727 = vunpack.c.h.b16 %v2568
    %v2728 = vunpack.c.l.b16 %v2569
    %v2729 = vunpack.c.h.b16 %v2569
    %v2730 = vunpack.c.l.b16 %v2570
    %v2731 = vunpack.c.h.b16 %v2570
    %v2732 = vunpack.c.l.b16 %v2571
    %v2733 = vunpack.c.h.b16 %v2571
    %v2734 = vunpack.c.l.b16 %v2572
    %v2735 = vunpack.c.h.b16 %v2572
    %v2736 = vunpack.c.l.b16 %v2573
    %v2737 = vunpack.c.h.b16 %v2573
    %v2738 = vunpack.c.l.b16 %v2574
    %v2739 = vunpack.c.h.b16 %v2574
    %v2740 = vunpack.c.l.b16 %v2575
    %v2741 = vunpack.c.h.b16 %v2575
    %v2742 = vunpack.c.l.b16 %v2576
    %v2743 = vunpack.c.h.b16 %v2576
    %v2744 = vunpack.c.l.b16 %v2577
    %v2745 = vunpack.c.h.b16 %v2577
    %v2746 = vunpack.c.l.b16 %v2578
    %v2747 = vunpack.c.h.b16 %v2578
    %v2748 = vunpack.c.l.b16 %v2579
    %v2749 = vunpack.c.h.b16 %v2579
    %v2750 = vunpack.c.l.b16 %v2580
    %v2751 = vunpack.c.h.b16 %v2580
    %v2752 = vunpack.c.l.b16 %v2581
    %v2753 = vunpack.c.h.b16 %v2581
    %v2754 = vunpack.c.l.b16 %v2582
    %v2755 = vunpack.c.h.b16 %v2582
    %v2756 = vunpack.c.l.b16 %v2583
    %v2757 = vunpack.c.h.b16 %v2583
    %v2758 = vunpack.c.l.b16 %v2584
    %v2759 = vunpack.c.h.b16 %v2584
    %v2760 = vunpack.c.l.b16 %v2585
    %v2761 = vunpack.c.h.b16 %v2585
    %v2762 = vunpack.c.l.b16 %v2586
    %v2763 = vunpack.c.h.b16 %v2586
    %v2764 = vunpack.c.l.b16 %v2587
    %v2765 = vunpack.c.h.b16 %v2587
    %v2766 = vunpack.c.l.b16 %v2588
    %v2767 = vunpack.c.h.b16 %v2588
    %v2768 = vunpack.c.l.b16 %v2589
    %v2769 = vunpack.c.h.b16 %v2589
    %v2770 = vunpack.c.l.b16 %v2590
    %v2771 = vunpack.c.h.b16 %v2590
    %v2772 = vunpack.c.l.b16 %v2591
    %v2773 = vunpack.c.h.b16 %v2591
    %v2774 = vunpack.c.l.b16 %v2592
    %v2775 = vunpack.c.h.b16 %v2592
    %v2776 = vunpack.c.l.b16 %v2593
    %v2777 = vunpack.c.h.b16 %v2593
    %v2778 = vunpack.c.l.b16 %v2594
    %v2779 = vunpack.c.h.b16 %v2594
    %v2780 = vunpack.c.l.b16 %v2595
    %v2781 = vunpack.c.h.b16 %v2595
    %v2782 = vunpack.c.l.b16 %v2596
    %v2783 = vunpack.c.h.b16 %v2596
    %v2784 = vunpack.c.l.b16 %v2597
    %v2785 = vunpack.c.h.b16 %v2597
    %v2786 = vunpack.c.l.b16 %v2598
    %v2787 = vunpack.c.h.b16 %v2598
    %v2788 = vunpack.c.l.b16 %v2599
    %v2789 = vunpack.c.h.b16 %v2599
    %v2790 = vunpack.c.l.b16 %v2600
    %v2791 = vunpack.c.h.b16 %v2600
    %v2792 = vunpack.c.l.b16 %v2601
    %v2793 = vunpack.c.h.b16 %v2601
    %v2794 = vunpack.c.l.b16 %v2602
    %v2795 = vunpack.c.h.b16 %v2602
    %v2796 = vunpack.c.l.b16 %v2603
    %v2797 = vunpack.c.h.b16 %v2603
    %v2798 = vunpack.c.l.b16 %v2604
    %v2799 = vunpack.c.h.b16 %v2604
    %v2800 = vunpack.c.l.b16 %v2605
    %v2801 = vunpack.c.h.b16 %v2605
    %v2802 = vunpack.c.l.b16 %v2606
    %v2803 = vunpack.c.h.b16 %v2606
    %v2804 = vunpack.c.l.b16 %v2607
    %v2805 = vunpack.c.h.b16 %v2607
    %v2806 = vunpack.c.l.b16 %v2608
    %v2807 = vunpack.c.h.b16 %v2608
    %v2808 = vunpack.c.l.b16 %v2609
    %v2809 = vunpack.c.h.b16 %v2609
    %v2810 = vunpack.c.l.b16 %v2610
    %v2811 = vunpack.c.h.b16 %v2610
    %v2812 = vunpack.c.l.b16 %v2611
    %v2813 = vunpack.c.h.b16 %v2611
    %v2814 = vunpack.c.l.b16 %v2612
    %v2815 = vunpack.c.h.b16 %v2612
    %v2816 = vunpack.c.l.b16 %v2613
    %v2817 = vunpack.c.h.b16 %v2613
    %v2818 = vunpack.c.l.b16 %v2614
    %v2819 = vunpack.c.h.b16 %v2614
    %v2820 = vunpack.c.l.b16 %v2615
    %v2821 = vunpack.c.h.b16 %v2615
    %v2822 = vunpack.c.l.b16 %v2616
    %v2823 = vunpack.c.h.b16 %v2616
    %v2824 = vunpack.c.l.b16 %v2617
    %v2825 = vunpack.c.h.b16 %v2617
    %v2826 = vunpack.c.l.b16 %v2618
    %v2827 = vunpack.c.h.b16 %v2618
    %v2828 = vunpack.c.l.b16 %v2619
    %v2829 = vunpack.c.h.b16 %v2619
    %v2830 = vunpack.c.l.b16 %v2620
    %v2831 = vunpack.c.h.b16 %v2620
    %v2832 = vunpack.c.l.b16 %v2621
    %v2833 = vunpack.c.h.b16 %v2621
    %v2834 = vunpack.c.l.b16 %v2622
    %v2835 = vunpack.c.h.b16 %v2622
    %v2836 = vunpack.c.l.b16 %v2623
    %v2837 = vunpack.c.h.b16 %v2623
    %v2838 = vpack.c.b16 %v2714, %v2710
    %v2839 = vpack.c.b16 %v2715, %v2711
    %v2840 = vpack.c.b16 %v2716, %v2712
    %v2841 = vpack.c.b16 %v2717, %v2713
    %v2842 = vpack.c.b16 %v2722, %v2718
    %v2843 = vpack.c.b16 %v2723, %v2719
    %v2844 = vpack.c.b16 %v2724, %v2720
    %v2845 = vpack.c.b16 %v2725, %v2721
    %v2846 = vpack.c.b16 %v2730, %v2726
    %v2847 = vpack.c.b16 %v2731, %v2727
    %v2848 = vpack.c.b16 %v2732, %v2728
    %v2849 = vpack.c.b16 %v2733, %v2729
    %v2850 = vpack.c.b16 %v2738, %v2734
    %v2851 = vpack.c.b16 %v2739, %v2735
    %v2852 = vpack.c.b16 %v2740, %v2736
    %v2853 = vpack.c.b16 %v2741, %v2737
    %v2854 = vpack.c.b16 %v2746, %v2742
    %v2855 = vpack.c.b16 %v2747, %v2743
    %v2856 = vpack.c.b16 %v2748, %v2744
    %v2857 = vpack.c.b16 %v2749, %v2745
    %v2858 = vpack.c.b16 %v2754, %v2750
    %v2859 = vpack.c.b16 %v2755, %v2751
    %v2860 = vpack.c.b16 %v2756, %v2752
    %v2861 = vpack.c.b16 %v2757, %v2753
    %v2862 = vpack.c.b16 %v2762, %v2758
    %v2863 = vpack.c.b16 %v2763, %v2759
    %v2864 = vpack.c.b16 %v2764, %v2760
    %v2865 = vpack.c.b16 %v2765, %v2761
    %v2866 = vpack.c.b16 %v2770, %v2766
    %v2867 = vpack.c.b16 %v2771, %v2767
    %v2868 = vpack.c.b16 %v2772, %v2768
    %v2869 = vpack.c.b16 %v2773, %v2769
    %v2870 = vpack.c.b16 %v2778, %v2774
    %v2871 = vpack.c.b16 %v2779, %v2775
    %v2872 = vpack.c.b16 %v2780, %v2776
    %v2873 = vpack.c.b16 %v2781, %v2777
    %v2874 = vpack.c.b16 %v2786, %v2782
    %v2875 = vpack.c.b16 %v2787, %v2783
    %v2876 = vpack.c.b16 %v2788, %v2784
    %v2877 = vpack.c.b16 %v2789, %v2785
    %v2878 = vpack.c.b16 %v2794, %v2790
    %v2879 = vpack.c.b16 %v2795, %v2791
    %v2880 = vpack.c.b16 %v2796, %v2792
    %v2881 = vpack.c.b16 %v2797, %v2793
    %v2882 = vpack.c.b16 %v2802, %v2798
    %v2883 = vpack.c.b16 %v2803, %v2799
    %v2884 = vpack.c.b16 %v2804, %v2800
    %v2885 = vpack.c.b16 %v2805, %v2801
    %v2886 = vpack.c.b16 %v2810, %v2806
    %v2887 = vpack.c.b16 %v2811, %v2807
    %v2888 = vpack.c.b16 %v2812, %v2808
    %v2889 = vpack.c.b16 %v2813, %v2809
    %v2890 = vpack.c.b16 %v2818, %v2814
    %v2891 = vpack.c.b16 %v2819, %v2815
    %v2892 = vpack.c.b16 %v2820, %v2816
    %v2893 = vpack.c.b16 %v2821, %v2817
    %v2894 = vpack.c.b16 %v2826, %v2822
    %v2895 = vpack.c.b16 %v2827, %v2823
    %v2896 = vpack.c.b16 %v2828, %v2824
    %v2897 = vpack.c.b16 %v2829, %v2825
    %v2898 = vpack.c.b16 %v2834, %v2830
    %v2899 = vpack.c.b16 %v2835, %v2831
    %v2900 = vpack.c.b16 %v2836, %v2832
    %v2901 = vpack.c.b16 %v2837, %v2833
    %2966 = vmatprep.subr.bf16.mxu0 %v2839
    %2967 = vmatpush1.bf16.msra.mxu0 %v2838
    %2968 = vmatprep.subr.bf16.mxu0 %v2843
    %2969 = vmatpush1.bf16.msra.mxu0 %v2842
    %2970 = vmatprep.subr.bf16.mxu0 %v2847
    %2971 = vmatpush1.bf16.msra.mxu0 %v2846
    %2972 = vmatprep.subr.bf16.mxu0 %v2851
    %2973 = vmatpush1.bf16.msra.mxu0 %v2850
    %2974 = vmatprep.subr.bf16.mxu0 %v2855
    %2975 = vmatpush1.bf16.msra.mxu0 %v2854
    %2976 = vmatprep.subr.bf16.mxu0 %v2859
    %2977 = vmatpush1.bf16.msra.mxu0 %v2858
    %2978 = vmatprep.subr.bf16.mxu0 %v2863
    %2979 = vmatpush1.bf16.msra.mxu0 %v2862
    %2980 = vmatprep.subr.bf16.mxu0 %v2867
    %2981 = vmatpush1.bf16.msra.mxu0 %v2866
    %2982 = vmatprep.subr.bf16.mxu0 %v2871
    %2983 = vmatpush1.bf16.msra.mxu0 %v2870
    %2984 = vmatprep.subr.bf16.mxu0 %v2875
    %2985 = vmatpush1.bf16.msra.mxu0 %v2874
    %2986 = vmatprep.subr.bf16.mxu0 %v2879
    %2987 = vmatpush1.bf16.msra.mxu0 %v2878
    %2988 = vmatprep.subr.bf16.mxu0 %v2883
    %2989 = vmatpush1.bf16.msra.mxu0 %v2882
    %2990 = vmatprep.subr.bf16.mxu0 %v2887
    %2991 = vmatpush1.bf16.msra.mxu0 %v2886
    %2992 = vmatprep.subr.bf16.mxu0 %v2891
    %2993 = vmatpush1.bf16.msra.mxu0 %v2890
    %2994 = vmatprep.subr.bf16.mxu0 %v2895
    %2995 = vmatpush1.bf16.msra.mxu0 %v2894
    %2996 = vmatprep.subr.bf16.mxu0 %v2899
    %2997 = vmatpush1.bf16.msra.mxu0 %v2898
    %2998 = vmatprep.mubr.bf16.mxu0 %v2559
    %2999 = vmatmul.mubr.bf16.gmra.mrb[0].mxu0 %v2558
    %v3000 = vpop.f32.mrb[0].mxu0
    %v3001 = vadd.f32 %v2629, %v3000
    %v3002 = vpop.f32.mrb[0].mxu0
    %v3003 = vadd.f32 %v2633, %v3002
    %v3004 = vpop.f32.mrb[0].mxu0
    %v3005 = vpop.f32.mrb[0].mxu0
    %3006 = vdwg.mxu0
    %3007 = vmatprep.subr.bf16.mxu0 %v2841
    %3008 = vmatpush1.bf16.msra.mxu0 %v2840
    %3009 = vmatprep.subr.bf16.mxu0 %v2845
    %3010 = vmatpush1.bf16.msra.mxu0 %v2844
    %3011 = vmatprep.subr.bf16.mxu0 %v2849
    %3012 = vmatpush1.bf16.msra.mxu0 %v2848
    %3013 = vmatprep.subr.bf16.mxu0 %v2853
    %3014 = vmatpush1.bf16.msra.mxu0 %v2852
    %3015 = vmatprep.subr.bf16.mxu0 %v2857
    %3016 = vmatpush1.bf16.msra.mxu0 %v2856
    %3017 = vmatprep.subr.bf16.mxu0 %v2861
    %3018 = vmatpush1.bf16.msra.mxu0 %v2860
    %3019 = vmatprep.subr.bf16.mxu0 %v2865
    %3020 = vmatpush1.bf16.msra.mxu0 %v2864
    %3021 = vmatprep.subr.bf16.mxu0 %v2869
    %3022 = vmatpush1.bf16.msra.mxu0 %v2868
    %3023 = vmatprep.subr.bf16.mxu0 %v2873
    %3024 = vmatpush1.bf16.msra.mxu0 %v2872
    %3025 = vmatprep.subr.bf16.mxu0 %v2877
    %3026 = vmatpush1.bf16.msra.mxu0 %v2876
    %3027 = vmatprep.subr.bf16.mxu0 %v2881
    %3028 = vmatpush1.bf16.msra.mxu0 %v2880
    %3029 = vmatprep.subr.bf16.mxu0 %v2885
    %3030 = vmatpush1.bf16.msra.mxu0 %v2884
    %3031 = vmatprep.subr.bf16.mxu0 %v2889
    %3032 = vmatpush1.bf16.msra.mxu0 %v2888
    %3033 = vmatprep.subr.bf16.mxu0 %v2893
    %3034 = vmatpush1.bf16.msra.mxu0 %v2892
    %3035 = vmatprep.subr.bf16.mxu0 %v2897
    %3036 = vmatpush1.bf16.msra.mxu0 %v2896
    %3037 = vmatprep.subr.bf16.mxu0 %v2901
    %3038 = vmatpush1.bf16.msra.mxu0 %v2900
    %3039 = vmatprep.mubr.bf16.mxu0 %v2559
    %3040 = vmatmul.mubr.bf16.gmra.mrb[0].mxu0 %v2558
    %v3041 = vpop.f32.mrb[0].mxu0
    %v3042 = vadd.f32 %v2637, %v3041
    %v3043 = vpop.f32.mrb[0].mxu0
    %v3044 = vadd.f32 %v2641, %v3043
    %v3045 = vpop.f32.mrb[0].mxu0
    %v3046 = vpop.f32.mrb[0].mxu0
    %3047 = vdwg.mxu0
    %v3048 = vmax.f32 %v3001, 0.0
    %v3049 = vmax.f32 %v3003, 0.0
    %v3050 = vmax.f32 %v3042, 0.0
    %v3051 = vmax.f32 %v3044, 0.0
    %v3052 = vpack.c.bf16 %v3048, %v3048
    %v3053 = vpack.c.bf16 %v3049, %v3049
    %v3054 = vpack.c.bf16 %v3050, %v3050
    %v3055 = vpack.c.bf16 %v3051, %v3051
    %v3056 = vld [vmem:[%s9] sm:$0xf]
    %v3057 = vld [vmem:[%s9 + $0x4] sm:$0xf]
    %v3058 = vld [vmem:[%s9 + $0x8] sm:$0xf]
    %v3059 = vld [vmem:[%s9 + $0xc] sm:$0xf]
    %v3060 = vld [vmem:[%s9 + $0x10] sm:$0xf]
    %v3061 = vld [vmem:[%s9 + $0x14] sm:$0xf]
    %v3062 = vld [vmem:[%s9 + $0x18] sm:$0xf]
    %v3063 = vld [vmem:[%s9 + $0x1c] sm:$0xf]
    %v3064 = vld [vmem:[%s9 + $0x20] sm:$0xf]
    %v3065 = vld [vmem:[%s9 + $0x24] sm:$0xf]
    %v3066 = vld [vmem:[%s9 + $0x28] sm:$0xf]
    %v3067 = vld [vmem:[%s9 + $0x2c] sm:$0xf]
    %v3068 = vld [vmem:[%s9 + $0x30] sm:$0xf]
    %v3069 = vld [vmem:[%s9 + $0x34] sm:$0xf]
    %v3070 = vld [vmem:[%s9 + $0x38] sm:$0xf]
    %v3071 = vld [vmem:[%s9 + $0x3c] sm:$0xf]
    %v3072 = vld [vmem:[%s9 + $0x40] sm:$0xf]
    %v3073 = vld [vmem:[%s9 + $0x44] sm:$0xf]
    %v3074 = vld [vmem:[%s9 + $0x48] sm:$0xf]
    %v3075 = vld [vmem:[%s9 + $0x4c] sm:$0xf]
    %v3076 = vld [vmem:[%s9 + $0x50] sm:$0xf]
    %v3077 = vld [vmem:[%s9 + $0x54] sm:$0xf]
    %v3078 = vld [vmem:[%s9 + $0x58] sm:$0xf]
    %v3079 = vld [vmem:[%s9 + $0x5c] sm:$0xf]
    %v3080 = vld [vmem:[%s9 + $0x60] sm:$0xf]
    %v3081 = vld [vmem:[%s9 + $0x64] sm:$0xf]
    %v3082 = vld [vmem:[%s9 + $0x68] sm:$0xf]
    %v3083 = vld [vmem:[%s9 + $0x6c] sm:$0xf]
    %v3084 = vld [vmem:[%s9 + $0x70] sm:$0xf]
    %v3085 = vld [vmem:[%s9 + $0x74] sm:$0xf]
    %v3086 = vld [vmem:[%s9 + $0x78] sm:$0xf]
    %v3087 = vld [vmem:[%s9 + $0x7c] sm:$0xf]
    %v3088 = vld [vmem:[%s9 + $0x80] sm:$0xf]
    %v3089 = vld [vmem:[%s9 + $0x84] sm:$0xf]
    %v3090 = vld [vmem:[%s9 + $0x88] sm:$0xf]
    %v3091 = vld [vmem:[%s9 + $0x8c] sm:$0xf]
    %v3092 = vld [vmem:[%s9 + $0x90] sm:$0xf]
    %v3093 = vld [vmem:[%s9 + $0x94] sm:$0xf]
    %v3094 = vld [vmem:[%s9 + $0x98] sm:$0xf]
    %v3095 = vld [vmem:[%s9 + $0x9c] sm:$0xf]
    %v3096 = vld [vmem:[%s9 + $0xa0] sm:$0xf]
    %v3097 = vld [vmem:[%s9 + $0xa4] sm:$0xf]
    %v3098 = vld [vmem:[%s9 + $0xa8] sm:$0xf]
    %v3099 = vld [vmem:[%s9 + $0xac] sm:$0xf]
    %v3100 = vld [vmem:[%s9 + $0xb0] sm:$0xf]
    %v3101 = vld [vmem:[%s9 + $0xb4] sm:$0xf]
    %v3102 = vld [vmem:[%s9 + $0xb8] sm:$0xf]
    %v3103 = vld [vmem:[%s9 + $0xbc] sm:$0xf]
    %v3104 = vld [vmem:[%s9 + $0xc0] sm:$0xf]
    %v3105 = vld [vmem:[%s9 + $0xc4] sm:$0xf]
    %v3106 = vld [vmem:[%s9 + $0xc8] sm:$0xf]
    %v3107 = vld [vmem:[%s9 + $0xcc] sm:$0xf]
    %v3108 = vld [vmem:[%s9 + $0xd0] sm:$0xf]
    %v3109 = vld [vmem:[%s9 + $0xd4] sm:$0xf]
    %v3110 = vld [vmem:[%s9 + $0xd8] sm:$0xf]
    %v3111 = vld [vmem:[%s9 + $0xdc] sm:$0xf]
    %v3112 = vld [vmem:[%s9 + $0xe0] sm:$0xf]
    %v3113 = vld [vmem:[%s9 + $0xe4] sm:$0xf]
    %v3114 = vld [vmem:[%s9 + $0xe8] sm:$0xf]
    %v3115 = vld [vmem:[%s9 + $0xec] sm:$0xf]
    %v3116 = vld [vmem:[%s9 + $0xf0] sm:$0xf]
    %v3117 = vld [vmem:[%s9 + $0xf4] sm:$0xf]
    %v3118 = vld [vmem:[%s9 + $0xf8] sm:$0xf]
    %v3119 = vld [vmem:[%s9 + $0xfc] sm:$0xf]
    %v3120 = vld [vmem:[%s10] sm:$0x1]
    %v3122 = vlaneseq
    %v3123 = vshrl.u32 %v3122, 7
    %v3124 = vsub.s32 0, %v3123
    %v3125 = vrot.slane %v3120, %v3124
    %v3191 = vunpack.c.l.b16 %v3056
    %v3192 = vunpack.c.l.b16 %v3057
    %v3193 = vunpack.c.l.b16 %v3058
    %v3194 = vunpack.c.l.b16 %v3059
    %v3195 = vunpack.c.l.b16 %v3060
    %v3196 = vunpack.c.l.b16 %v3061
    %v3197 = vunpack.c.l.b16 %v3062
    %v3198 = vunpack.c.l.b16 %v3063
    %v3199 = vunpack.c.l.b16 %v3064
    %v3200 = vunpack.c.l.b16 %v3065
    %v3201 = vunpack.c.l.b16 %v3066
    %v3202 = vunpack.c.l.b16 %v3067
    %v3203 = vunpack.c.l.b16 %v3068
    %v3204 = vunpack.c.l.b16 %v3069
    %v3205 = vunpack.c.l.b16 %v3070
    %v3206 = vunpack.c.l.b16 %v3071
    %v3207 = vunpack.c.l.b16 %v3072
    %v3208 = vunpack.c.l.b16 %v3073
    %v3209 = vunpack.c.l.b16 %v3074
    %v3210 = vunpack.c.l.b16 %v3075
    %v3211 = vunpack.c.l.b16 %v3076
    %v3212 = vunpack.c.l.b16 %v3077
    %v3213 = vunpack.c.l.b16 %v3078
    %v3214 = vunpack.c.l.b16 %v3079
    %v3215 = vunpack.c.l.b16 %v3080
    %v3216 = vunpack.c.l.b16 %v3081
    %v3217 = vunpack.c.l.b16 %v3082
    %v3218 = vunpack.c.l.b16 %v3083
    %v3219 = vunpack.c.l.b16 %v3084
    %v3220 = vunpack.c.l.b16 %v3085
    %v3221 = vunpack.c.l.b16 %v3086
    %v3222 = vunpack.c.l.b16 %v3087
    %v3223 = vunpack.c.l.b16 %v3088
    %v3224 = vunpack.c.l.b16 %v3089
    %v3225 = vunpack.c.l.b16 %v3090
    %v3226 = vunpack.c.l.b16 %v3091
    %v3227 = vunpack.c.l.b16 %v3092
    %v3228 = vunpack.c.l.b16 %v3093
    %v3229 = vunpack.c.l.b16 %v3094
    %v3230 = vunpack.c.l.b16 %v3095
    %v3231 = vunpack.c.l.b16 %v3096
    %v3232 = vunpack.c.l.b16 %v3097
    %v3233 = vunpack.c.l.b16 %v3098
    %v3234 = vunpack.c.l.b16 %v3099
    %v3235 = vunpack.c.l.b16 %v3100
    %v3236 = vunpack.c.l.b16 %v3101
    %v3237 = vunpack.c.l.b16 %v3102
    %v3238 = vunpack.c.l.b16 %v3103
    %v3239 = vunpack.c.l.b16 %v3104
    %v3240 = vunpack.c.l.b16 %v3105
    %v3241 = vunpack.c.l.b16 %v3106
    %v3242 = vunpack.c.l.b16 %v3107
    %v3243 = vunpack.c.l.b16 %v3108
    %v3244 = vunpack.c.l.b16 %v3109
    %v3245 = vunpack.c.l.b16 %v3110
    %v3246 = vunpack.c.l.b16 %v3111
    %v3247 = vunpack.c.l.b16 %v3112
    %v3248 = vunpack.c.l.b16 %v3113
    %v3249 = vunpack.c.l.b16 %v3114
    %v3250 = vunpack.c.l.b16 %v3115
    %v3251 = vunpack.c.l.b16 %v3116
    %v3252 = vunpack.c.l.b16 %v3117
    %v3253 = vunpack.c.l.b16 %v3118
    %v3254 = vunpack.c.l.b16 %v3119
    %v3255 = vpack.c.b16 %v3192, %v3191
    %v3256 = vpack.c.b16 %v3194, %v3193
    %v3257 = vpack.c.b16 %v3196, %v3195
    %v3258 = vpack.c.b16 %v3198, %v3197
    %v3259 = vpack.c.b16 %v3200, %v3199
    %v3260 = vpack.c.b16 %v3202, %v3201
    %v3261 = vpack.c.b16 %v3204, %v3203
    %v3262 = vpack.c.b16 %v3206, %v3205
    %v3263 = vpack.c.b16 %v3208, %v3207
    %v3264 = vpack.c.b16 %v3210, %v3209
    %v3265 = vpack.c.b16 %v3212, %v3211
    %v3266 = vpack.c.b16 %v3214, %v3213
    %v3267 = vpack.c.b16 %v3216, %v3215
    %v3268 = vpack.c.b16 %v3218, %v3217
    %v3269 = vpack.c.b16 %v3220, %v3219
    %v3270 = vpack.c.b16 %v3222, %v3221
    %v3271 = vpack.c.b16 %v3224, %v3223
    %v3272 = vpack.c.b16 %v3226, %v3225
    %v3273 = vpack.c.b16 %v3228, %v3227
    %v3274 = vpack.c.b16 %v3230, %v3229
    %v3275 = vpack.c.b16 %v3232, %v3231
    %v3276 = vpack.c.b16 %v3234, %v3233
    %v3277 = vpack.c.b16 %v3236, %v3235
    %v3278 = vpack.c.b16 %v3238, %v3237
    %v3279 = vpack.c.b16 %v3240, %v3239
    %v3280 = vpack.c.b16 %v3242, %v3241
    %v3281 = vpack.c.b16 %v3244, %v3243
    %v3282 = vpack.c.b16 %v3246, %v3245
    %v3283 = vpack.c.b16 %v3248, %v3247
    %v3284 = vpack.c.b16 %v3250, %v3249
    %v3285 = vpack.c.b16 %v3252, %v3251
    %v3286 = vpack.c.b16 %v3254, %v3253
    %3319 = vmatprep.subr.bf16.mxu0 0
    %3320 = vmatpush1.bf16.msra.mxu0 %v3255
    %3321 = vmatprep.subr.bf16.mxu0 0
    %3322 = vmatpush1.bf16.msra.mxu0 %v3256
    %3323 = vmatprep.subr.bf16.mxu0 0
    %3324 = vmatpush1.bf16.msra.mxu0 %v3257
    %3325 = vmatprep.subr.bf16.mxu0 0
    %3326 = vmatpush1.bf16.msra.mxu0 %v3258
    %3327 = vmatprep.subr.bf16.mxu0 0
    %3328 = vmatpush1.bf16.msra.mxu0 %v3259
    %3329 = vmatprep.subr.bf16.mxu0 0
    %3330 = vmatpush1.bf16.msra.mxu0 %v3260
    %3331 = vmatprep.subr.bf16.mxu0 0
    %3332 = vmatpush1.bf16.msra.mxu0 %v3261
    %3333 = vmatprep.subr.bf16.mxu0 0
    %3334 = vmatpush1.bf16.msra.mxu0 %v3262
    %3335 = vmatprep.subr.bf16.mxu0 0
    %3336 = vmatpush1.bf16.msra.mxu0 %v3263
    %3337 = vmatprep.subr.bf16.mxu0 0
    %3338 = vmatpush1.bf16.msra.mxu0 %v3264
    %3339 = vmatprep.subr.bf16.mxu0 0
    %3340 = vmatpush1.bf16.msra.mxu0 %v3265
    %3341 = vmatprep.subr.bf16.mxu0 0
    %3342 = vmatpush1.bf16.msra.mxu0 %v3266
    %3343 = vmatprep.subr.bf16.mxu0 0
    %3344 = vmatpush1.bf16.msra.mxu0 %v3267
    %3345 = vmatprep.subr.bf16.mxu0 0
    %3346 = vmatpush1.bf16.msra.mxu0 %v3268
    %3347 = vmatprep.subr.bf16.mxu0 0
    %3348 = vmatpush1.bf16.msra.mxu0 %v3269
    %3349 = vmatprep.subr.bf16.mxu0 0
    %3350 = vmatpush1.bf16.msra.mxu0 %v3270
    %3351 = vmatprep.mubr.bf16.mxu0 %v3053
    %3352 = vmatmul.mubr.bf16.gmra.mrb[0].mxu0 %v3052
    %v3353 = vpop.f32.mrb[0].mxu0
    %v3354 = vadd.f32 %v3125, %v3353
    %v3355 = vpop.f32.mrb[0].mxu0
    %v3356 = vpop.f32.mrb[0].mxu0
    %v3357 = vpop.f32.mrb[0].mxu0
    %3358 = vdwg.mxu0
    %3359 = vmatprep.subr.bf16.mxu0 0
    %3360 = vmatpush1.bf16.msra.mxu0 %v3271
    %3361 = vmatprep.subr.bf16.mxu0 0
    %3362 = vmatpush1.bf16.msra.mxu0 %v3272
    %3363 = vmatprep.subr.bf16.mxu0 0
    %3364 = vmatpush1.bf16.msra.mxu0 %v3273
    %3365 = vmatprep.subr.bf16.mxu0 0
    %3366 = vmatpush1.bf16.msra.mxu0 %v3274
    %3367 = vmatprep.subr.bf16.mxu0 0
    %3368 = vmatpush1.bf16.msra.mxu0 %v3275
    %3369 = vmatprep.subr.bf16.mxu0 0
    %3370 = vmatpush1.bf16.msra.mxu0 %v3276
    %3371 = vmatprep.subr.bf16.mxu0 0
    %3372 = vmatpush1.bf16.msra.mxu0 %v3277
    %3373 = vmatprep.subr.bf16.mxu0 0
    %3374 = vmatpush1.bf16.msra.mxu0 %v3278
    %3375 = vmatprep.subr.bf16.mxu0 0
    %3376 = vmatpush1.bf16.msra.mxu0 %v3279
    %3377 = vmatprep.subr.bf16.mxu0 0
    %3378 = vmatpush1.bf16.msra.mxu0 %v3280
    %3379 = vmatprep.subr.bf16.mxu0 0
    %3380 = vmatpush1.bf16.msra.mxu0 %v3281
    %3381 = vmatprep.subr.bf16.mxu0 0
    %3382 = vmatpush1.bf16.msra.mxu0 %v3282
    %3383 = vmatprep.subr.bf16.mxu0 0
    %3384 = vmatpush1.bf16.msra.mxu0 %v3283
    %3385 = vmatprep.subr.bf16.mxu0 0
    %3386 = vmatpush1.bf16.msra.mxu0 %v3284
    %3387 = vmatprep.subr.bf16.mxu0 0
    %3388 = vmatpush1.bf16.msra.mxu0 %v3285
    %3389 = vmatprep.subr.bf16.mxu0 0
    %3390 = vmatpush1.bf16.msra.mxu0 %v3286
    %3391 = vmatprep.mubr.bf16.mxu0 %v3055
    %3392 = vmatmul.mubr.bf16.gmra.mrb[0].mxu0 %v3054
    %v3393 = vpop.f32.mrb[0].mxu0
    %v3394 = vadd.f32 %v3354, %v3393
    %v3395 = vpop.f32.mrb[0].mxu0
    %v3396 = vpop.f32.mrb[0].mxu0
    %v3397 = vpop.f32.mrb[0].mxu0
    %3398 = vdwg.mxu0
    %3399 = vst [vmem:[%s11] sm:$0xff] %v3394
    // Predicated region
    $region58: #{forward.1} parent=1 // pred_check
      _
    $region59: #{forward.1} parent=1 // pred_check_branch
      %3401 = sbr.rel (0) target = $region61
    $region60: #{forward.1} parent=1 // pred_region
      _
    $region61: #{forward.1} parent=1 // pred_fallthru
      _
    // Predicated region
    $region62: #{forward.1} parent=1 // pred_check
      _
    $region63: #{forward.1} parent=1 // pred_check_branch
      %3403 = sbr.rel (0) target = $region65
    $region64: #{forward.1} parent=1 // pred_region
      _
    $region65: #{forward.1} parent=1 // pred_fallthru
      _
    %3404 = vsyncpa [#allocation3], 1
    %3405 = vsyncpa [#allocation5], 1

</llo_original>
